<compile_context>
chip_gen: v6e
topology: v6e:2x2x1
jax: 0.10.0
libtpu: 0.0.40
codegen_flags: <defaults>
</compile_context>

<pallas_src>
import math

import jax
import jax.numpy as jnp
from jax import lax
from jax.experimental import pallas as pl
from jax.experimental.pallas import tpu as pltpu


# ----------------------------------------------------------------------------
# Wrapper-side im2col (tiny XLA glue), emitted in pool-group order
# ----------------------------------------------------------------------------
def _im2col_pool_order(x_nhwc, K):
    """(N,H,W,C) -> (N, 4, PH*PW, K*K*C).

    Row block d = dh*2+dw holds the KxK patches for conv-output positions
    (2*ph+dh, 2*pw+dw), row-major over (ph, pw).  Lane order is (kh, kw, c),
    matching the packed weight layout.  The 2x2/2 max-pool then becomes a
    plain jnp.maximum over the 4 d-blocks inside the kernel.
    """
    N, H, W, C = x_nhwc.shape
    OH, OW = H - K + 1, W - K + 1
    PH, PW = OH // 2, OW // 2
    taps = [x_nhwc[:, kh:kh + OH, kw:kw + OW, :]
            for kh in range(K) for kw in range(K)]          # 25 x (N,OH,OW,C)
    p = jnp.stack(taps, axis=3).reshape(N, OH, OW, K * K * C)
    p = p.reshape(N, PH, 2, PW, 2, K * K * C)               # (n,ph,dh,pw,dw,t)
    p = jnp.transpose(p, (0, 2, 4, 1, 3, 5))                # (n,dh,dw,ph,pw,t)
    return p.reshape(N, 4, PH * PW, K * K * C)


# ----------------------------------------------------------------------------
# Fused conv(5x5,valid) GEMM + maxpool(2x2,2) + bias + ReLU kernel (per image)
# ----------------------------------------------------------------------------
def _conv_pool_kernel(x_ref, w_ref, b_ref, o_ref):
    """x_ref: (1, 4, P, T) bf16 im2col patches (pool-group order)
    w_ref: (T, Cout) bf16 packed (kh,kw,cin)->cout weights
    b_ref: (1, Cout) f32 bias
    o_ref: (1, P, Cout) bf16 pooled+ReLU'd activations, (ph,pw) row-major."""
    w = w_ref[...]
    acc = jnp.dot(x_ref[0, 0, :, :], w, preferred_element_type=jnp.float32)
    for d in range(1, 4):                                   # max-pool over the 2x2 window
        acc = jnp.maximum(
            acc, jnp.dot(x_ref[0, d, :, :], w, preferred_element_type=jnp.float32))
    # bias + ReLU commute with the max, so apply them once on the pooled result
    o_ref[0] = jnp.maximum(acc + b_ref[...], 0.0).astype(o_ref.dtype)


def conv_relu_pool(xcol, w, b):
    """(N, 4, P, T) bf16 -> (N, P, Cout) bf16."""
    N, _, P, T = xcol.shape
    Cout = w.shape[1]
    return pl.pallas_call(
        _conv_pool_kernel,
        out_shape=jax.ShapeDtypeStruct((N, P, Cout), jnp.bfloat16),
        grid=(N,),
        in_specs=[
            pl.BlockSpec((1, 4, P, T), lambda n: (n, 0, 0, 0)),
            pl.BlockSpec((T, Cout), lambda n: (0, 0)),      # weights stay resident
            pl.BlockSpec((1, Cout), lambda n: (0, 0)),
        ],
        out_specs=pl.BlockSpec((1, P, Cout), lambda n: (n, 0, 0)),
        compiler_params=pltpu.CompilerParams(dimension_semantics=("parallel",)),
    )(xcol, w, b)


# ----------------------------------------------------------------------------
# Fused fc1+ReLU -> fc2+ReLU -> fc3 kernel (intermediates stay in vregs)
# ----------------------------------------------------------------------------
def _fc_chain_kernel(x_ref, w1_ref, b1_ref, w2_ref, b2_ref, w3_ref, b3_ref, o_ref):
    h = jnp.dot(x_ref[...], w1_ref[...], preferred_element_type=jnp.float32)
    h = jnp.maximum(h + b1_ref[...], 0.0).astype(jnp.bfloat16)
    h = jnp.dot(h, w2_ref[...], preferred_element_type=jnp.float32)
    h = jnp.maximum(h + b2_ref[...], 0.0).astype(jnp.bfloat16)
    h = jnp.dot(h, w3_ref[...], preferred_element_type=jnp.float32)
    o_ref[...] = h + b3_ref[...]


def fc_chain(x, w1, b1, w2, b2, w3, b3):
    M, Kin = x.shape
    H1, H2, OUT = w1.shape[1], w2.shape[1], w3.shape[1]
    TB = M if M <= 128 else 128                     # batch (M) tile, "parallel" grid axis
    return pl.pallas_call(
        _fc_chain_kernel,
        out_shape=jax.ShapeDtypeStruct((M, OUT), jnp.float32),
        grid=(pl.cdiv(M, TB),),
        in_specs=[
            pl.BlockSpec((TB, Kin), lambda i: (i, 0)),
            pl.BlockSpec((Kin, H1), lambda i: (0, 0)),
            pl.BlockSpec((1, H1), lambda i: (0, 0)),
            pl.BlockSpec((H1, H2), lambda i: (0, 0)),
            pl.BlockSpec((1, H2), lambda i: (0, 0)),
            pl.BlockSpec((H2, OUT), lambda i: (0, 0)),
            pl.BlockSpec((1, OUT), lambda i: (0, 0)),
        ],
        out_specs=pl.BlockSpec((TB, OUT), lambda i: (i, 0)),
        compiler_params=pltpu.CompilerParams(dimension_semantics=("parallel",)),
    )(x, w1, b1, w2, b2, w3, b3)


# ----------------------------------------------------------------------------
# Parameters: PyTorch-layout init, then one-time repack to kernel layouts
# ----------------------------------------------------------------------------
def init_torch_params(key):
    ks = jax.random.split(key, 10)

    def u(k, shape, fan_in):
        bound = 1.0 / math.sqrt(fan_in)
        return jax.random.uniform(k, shape, jnp.float32, -bound, bound)

    return {
        "conv1_w": u(ks[0], (6, 3, 5, 5), 3 * 25),
        "conv1_b": u(ks[1], (6,), 3 * 25),
        "conv2_w": u(ks[2], (16, 6, 5, 5), 6 * 25),
        "conv2_b": u(ks[3], (16,), 6 * 25),
        "fc1_w": u(ks[4], (120, 400), 400),   # PyTorch Linear: (out, in)
        "fc1_b": u(ks[5], (120,), 400),
        "fc2_w": u(ks[6], (84, 120), 120),
        "fc2_b": u(ks[7], (84,), 120),
        "fc3_w": u(ks[8], (5, 84), 84),
        "fc3_b": u(ks[9], (5,), 84),
    }


def prep_params(raw):
    """One-time (outside jit) repack:
      conv weights -> compact (K*K*Cin, Cout) im2col matrices (cin padded only
      6->8 for conv2's input channels, cout padded only 6->8 for conv1),
      fc1 permuted to the (h, w, c) flatten order, fc3 lane-padded to 128 for a
      lane-dense final store.  Weights are bf16; biases stay f32 (added to the
      f32 accumulators).  All pad values are exact zeros (numerically inert)."""
    K = 5
    bf = lambda a: a.astype(jnp.bfloat16)
    # conv1: (6,3,5,5) OIHW -> (kh,kw,cin,cout) -> (75, 6) -> pad cout to 8
    c1 = jnp.transpose(raw["conv1_w"], (2, 3, 1, 0)).reshape(K * K * 3, 6)
    c1 = jnp.pad(c1, ((0, 0), (0, 2)))                                    # (75, 8)
    # conv2: (16,6,5,5) -> (kh,kw,cin,cout), pad cin 6->8 (matches a1's 8 ch) -> (200,16)
    c2 = jnp.transpose(raw["conv2_w"], (2, 3, 1, 0))                      # (5,5,6,16)
    c2 = jnp.pad(c2, ((0, 0), (0, 0), (0, 2), (0, 0))).reshape(K * K * 8, 16)
    # fc1: torch .view flattens (c,h,w); our flatten is (h,w,c) with c=16 exact
    f1 = jnp.transpose(raw["fc1_w"].reshape(120, 16, 5, 5), (2, 3, 1, 0)).reshape(400, 120)
    # fc3: keep the final output lane-dense (pad out-dim 5 -> 128 with zeros)
    f3 = jnp.pad(raw["fc3_w"].T, ((0, 0), (0, 128 - 5)))                  # (84, 128)
    b3 = jnp.pad(raw["fc3_b"], (0, 128 - 5)).reshape(1, 128)
    return {
        "c1_w": bf(c1), "c1_b": jnp.pad(raw["conv1_b"], (0, 2)).reshape(1, 8),
        "c2_w": bf(c2), "c2_b": raw["conv2_b"].reshape(1, 16),
        "fc1_w": bf(f1), "fc1_b": raw["fc1_b"].reshape(1, 120),
        "fc2_w": bf(raw["fc2_w"].T), "fc2_b": raw["fc2_b"].reshape(1, 84),
        "fc3_w": bf(f3), "fc3_b": b3,
    }


# ----------------------------------------------------------------------------
# Forward pass (3 Pallas kernels total) + pure-JAX f32 reference
# ----------------------------------------------------------------------------
@jax.jit
def net_forward(params, x):
    # x: (N, 3, 32, 32) float32, NCHW (PyTorch convention)
    N = x.shape[0]
    x_nhwc = jnp.transpose(x, (0, 2, 3, 1))                               # (N,32,32,3)
    xcol1 = _im2col_pool_order(x_nhwc, 5).astype(jnp.bfloat16)            # (N,4,196,75)
    a1 = conv_relu_pool(xcol1, params["c1_w"], params["c1_b"])            # (N,196,8) bf16
    xcol2 = _im2col_pool_order(a1.reshape(N, 14, 14, 8), 5)               # (N,4,25,200)
    a2 = conv_relu_pool(xcol2, params["c2_w"], params["c2_b"])            # (N,25,16) bf16
    flat = a2.reshape(N, 400)              # row-major (ph,pw,c): matches fc1_w repack
    out = fc_chain(flat, params["fc1_w"], params["fc1_b"],
                   params["fc2_w"], params["fc2_b"],
                   params["fc3_w"], params["fc3_b"])                      # (N,128) f32
    return out[:, :5]


@jax.jit
def reference_forward(raw, x):
    dn = ("NCHW", "OIHW", "NCHW")
    y = lax.conv_general_dilated(x, raw["conv1_w"], (1, 1), "VALID", dimension_numbers=dn)
    y = jax.nn.relu(y + raw["conv1_b"][None, :, None, None])
    y = lax.reduce_window(y, -jnp.inf, lax.max, (1, 1, 2, 2), (1, 1, 2, 2), "VALID")
    y = lax.conv_general_dilated(y, raw["conv2_w"], (1, 1), "VALID", dimension_numbers=dn)
    y = jax.nn.relu(y + raw["conv2_b"][None, :, None, None])
    y = lax.reduce_window(y, -jnp.inf, lax.max, (1, 1, 2, 2), (1, 1, 2, 2), "VALID")
    y = y.reshape(y.shape[0], -1)
    y = jax.nn.relu(y @ raw["fc1_w"].T + raw["fc1_b"])
    y = jax.nn.relu(y @ raw["fc2_w"].T + raw["fc2_b"])
    return y @ raw["fc3_w"].T + raw["fc3_b"]


if __name__ == "__main__":
    key = jax.random.PRNGKey(0)
    pkey, xkey = jax.random.split(key)
    raw = init_torch_params(pkey)
    params = prep_params(raw)
    # The architecture requires 32x32 spatial input (16*5*5 flatten); batch=2.
    x = jax.random.normal(xkey, (2, 3, 32, 32), dtype=jnp.float32)
    out = jax.block_until_ready(net_forward(params, x))
    assert out.shape == (2, 5) and out.dtype == jnp.float32
    ref = jax.block_until_ready(reference_forward(raw, x))
    err = float(jnp.max(jnp.abs(out - ref)))
    # bf16 weights/activations (f32 accumulation): observed error is ~1e-2 level.
    assert err < 1e-1, f"mismatch vs f32 reference: max abs err {err}"
    print("KERNEL_OK")
</pallas_src>

<mosaic_0001>
module attributes {stable_mosaic.version = 11 : i64} {
  func.func @_conv_pool_kernel(%arg0: i32, %arg1: memref<1x4x196x75xbf16, #tpu.memory_space<vmem>>, %arg2: memref<75x8xbf16, #tpu.memory_space<vmem>>, %arg3: memref<1x8xf32, #tpu.memory_space<vmem>>, %arg4: memref<1x196x8xbf16, #tpu.memory_space<vmem>>) attributes {dimension_semantics = [#tpu.dimension_semantics<parallel>], iteration_bounds = array<i64: 2>, scalar_prefetch = 0 : i64, scratch_operands = 0 : i64, tpu.core_type = #tpu.core_type<tc>, window_params = [{transform_indices = @transform_0, window_bounds = array<i64: 1, 4, 196, 75>}, {pipeline_mode = #tpu.pipeline_mode<synchronous>, transform_indices = @transform_1, window_bounds = array<i64: 75, 8>}, {pipeline_mode = #tpu.pipeline_mode<synchronous>, transform_indices = @transform_2, window_bounds = array<i64: 1, 8>}, {transform_indices = @transform_3, window_bounds = array<i64: 1, 196, 8>}]} {
    %c0 = arith.constant 0 : index
    %c0_0 = arith.constant 0 : index
    %0 = vector.load %arg2[%c0, %c0_0] : memref<75x8xbf16, #tpu.memory_space<vmem>>, vector<75x8xbf16>
    %c0_1 = arith.constant 0 : index
    %c0_2 = arith.constant 0 : index
    %c0_3 = arith.constant 0 : index
    %c0_4 = arith.constant 0 : index
    %1 = vector.load %arg1[%c0_1, %c0_2, %c0_3, %c0_4] : memref<1x4x196x75xbf16, #tpu.memory_space<vmem>>, vector<1x1x196x75xbf16>
    %2 = vector.shape_cast %1 : vector<1x1x196x75xbf16> to vector<196x75xbf16>
    %cst = arith.constant dense<0.000000e+00> : vector<196x8xf32>
    %3 = tpu.matmul %2, %0, %cst {dimension_numbers = #tpu.dot_dimension_numbers<[1], [0], [0], [1], [0, 0, 1, 1], [], []>} : vector<196x75xbf16>, vector<75x8xbf16>, vector<196x8xf32> -> vector<196x8xf32>
    %c0_5 = arith.constant 0 : index
    %c1 = arith.constant 1 : index
    %c0_6 = arith.constant 0 : index
    %c0_7 = arith.constant 0 : index
    %4 = vector.load %arg1[%c0_5, %c1, %c0_6, %c0_7] : memref<1x4x196x75xbf16, #tpu.memory_space<vmem>>, vector<1x1x196x75xbf16>
    %5 = vector.shape_cast %4 : vector<1x1x196x75xbf16> to vector<196x75xbf16>
    %cst_8 = arith.constant dense<0.000000e+00> : vector<196x8xf32>
    %6 = tpu.matmul %5, %0, %cst_8 {dimension_numbers = #tpu.dot_dimension_numbers<[1], [0], [0], [1], [0, 0, 1, 1], [], []>} : vector<196x75xbf16>, vector<75x8xbf16>, vector<196x8xf32> -> vector<196x8xf32>
    %7 = arith.maximumf %3, %6 : vector<196x8xf32>
    %c0_9 = arith.constant 0 : index
    %c2 = arith.constant 2 : index
    %c0_10 = arith.constant 0 : index
    %c0_11 = arith.constant 0 : index
    %8 = vector.load %arg1[%c0_9, %c2, %c0_10, %c0_11] : memref<1x4x196x75xbf16, #tpu.memory_space<vmem>>, vector<1x1x196x75xbf16>
    %9 = vector.shape_cast %8 : vector<1x1x196x75xbf16> to vector<196x75xbf16>
    %cst_12 = arith.constant dense<0.000000e+00> : vector<196x8xf32>
    %10 = tpu.matmul %9, %0, %cst_12 {dimension_numbers = #tpu.dot_dimension_numbers<[1], [0], [0], [1], [0, 0, 1, 1], [], []>} : vector<196x75xbf16>, vector<75x8xbf16>, vector<196x8xf32> -> vector<196x8xf32>
    %11 = arith.maximumf %7, %10 : vector<196x8xf32>
    %c0_13 = arith.constant 0 : index
    %c3 = arith.constant 3 : index
    %c0_14 = arith.constant 0 : index
    %c0_15 = arith.constant 0 : index
    %12 = vector.load %arg1[%c0_13, %c3, %c0_14, %c0_15] : memref<1x4x196x75xbf16, #tpu.memory_space<vmem>>, vector<1x1x196x75xbf16>
    %13 = vector.shape_cast %12 : vector<1x1x196x75xbf16> to vector<196x75xbf16>
    %cst_16 = arith.constant dense<0.000000e+00> : vector<196x8xf32>
    %14 = tpu.matmul %13, %0, %cst_16 {dimension_numbers = #tpu.dot_dimension_numbers<[1], [0], [0], [1], [0, 0, 1, 1], [], []>} : vector<196x75xbf16>, vector<75x8xbf16>, vector<196x8xf32> -> vector<196x8xf32>
    %15 = arith.maximumf %11, %14 : vector<196x8xf32>
    %c0_17 = arith.constant 0 : index
    %c0_18 = arith.constant 0 : index
    %16 = vector.load %arg3[%c0_17, %c0_18] : memref<1x8xf32, #tpu.memory_space<vmem>>, vector<1x8xf32>
    %17 = vector.broadcast %16 : vector<1x8xf32> to vector<196x8xf32>
    %18 = arith.addf %15, %17 : vector<196x8xf32>
    %cst_19 = arith.constant 0.000000e+00 : f32
    %19 = vector.broadcast %cst_19 : f32 to vector<196x8xf32>
    %20 = arith.maximumf %18, %19 : vector<196x8xf32>
    %21 = arith.truncf %20 : vector<196x8xf32> to vector<196x8xbf16>
    %c0_20 = arith.constant 0 : index
    %c0_21 = arith.constant 0 : index
    %c0_22 = arith.constant 0 : index
    %22 = vector.load %arg4[%c0_20, %c0_21, %c0_22] : memref<1x196x8xbf16, #tpu.memory_space<vmem>>, vector<1x196x8xbf16>
    %23 = vector.shape_cast %22 : vector<1x196x8xbf16> to vector<196x8xbf16>
    %24 = vector.shape_cast %21 : vector<196x8xbf16> to vector<1x196x8xbf16>
    tpu.vector_store %arg4[%c0_20, %c0_21, %c0_22], %24 {strides = array<i32>} : memref<1x196x8xbf16, #tpu.memory_space<vmem>>, vector<1x196x8xbf16>,
    return
  }
  func.func @transform_0(%arg0: i32) -> (i32, i32, i32, i32) {
    %c0_i32 = arith.constant 0 : i32
    %c0_i32_0 = arith.constant 0 : i32
    %c0_i32_1 = arith.constant 0 : i32
    %c0_i32_2 = arith.constant 0 : i32
    return %arg0, %c0_i32, %c0_i32_0, %c0_i32_1 : i32, i32, i32, i32
  }
  func.func @transform_1(%arg0: i32) -> (i32, i32) {
    %c0_i32 = arith.constant 0 : i32
    %c0_i32_0 = arith.constant 0 : i32
    %c0_i32_1 = arith.constant 0 : i32
    return %c0_i32, %c0_i32_0 : i32, i32
  }
  func.func @transform_2(%arg0: i32) -> (i32, i32) {
    %c0_i32 = arith.constant 0 : i32
    %c0_i32_0 = arith.constant 0 : i32
    %c0_i32_1 = arith.constant 0 : i32
    return %c0_i32, %c0_i32_0 : i32, i32
  }
  func.func @transform_3(%arg0: i32) -> (i32, i32, i32) {
    %c0_i32 = arith.constant 0 : i32
    %c0_i32_0 = arith.constant 0 : i32
    %c0_i32_1 = arith.constant 0 : i32
    return %arg0, %c0_i32, %c0_i32_0 : i32, i32, i32
  }
}

module attributes {stable_mosaic.version = 11 : i64} {
  func.func @_conv_pool_kernel(%arg0: i32, %arg1: memref<1x4x25x200xbf16, #tpu.memory_space<vmem>>, %arg2: memref<200x16xbf16, #tpu.memory_space<vmem>>, %arg3: memref<1x16xf32, #tpu.memory_space<vmem>>, %arg4: memref<1x25x16xbf16, #tpu.memory_space<vmem>>) attributes {dimension_semantics = [#tpu.dimension_semantics<parallel>], iteration_bounds = array<i64: 2>, scalar_prefetch = 0 : i64, scratch_operands = 0 : i64, tpu.core_type = #tpu.core_type<tc>, window_params = [{transform_indices = @transform_0, window_bounds = array<i64: 1, 4, 25, 200>}, {pipeline_mode = #tpu.pipeline_mode<synchronous>, transform_indices = @transform_1, window_bounds = array<i64: 200, 16>}, {pipeline_mode = #tpu.pipeline_mode<synchronous>, transform_indices = @transform_2, window_bounds = array<i64: 1, 16>}, {transform_indices = @transform_3, window_bounds = array<i64: 1, 25, 16>}]} {
    %c0 = arith.constant 0 : index
    %c0_0 = arith.constant 0 : index
    %0 = vector.load %arg2[%c0, %c0_0] : memref<200x16xbf16, #tpu.memory_space<vmem>>, vector<200x16xbf16>
    %c0_1 = arith.constant 0 : index
    %c0_2 = arith.constant 0 : index
    %c0_3 = arith.constant 0 : index
    %c0_4 = arith.constant 0 : index
    %1 = vector.load %arg1[%c0_1, %c0_2, %c0_3, %c0_4] : memref<1x4x25x200xbf16, #tpu.memory_space<vmem>>, vector<1x1x25x200xbf16>
    %2 = vector.shape_cast %1 : vector<1x1x25x200xbf16> to vector<25x200xbf16>
    %cst = arith.constant dense<0.000000e+00> : vector<25x16xf32>
    %3 = tpu.matmul %2, %0, %cst {dimension_numbers = #tpu.dot_dimension_numbers<[1], [0], [0], [1], [0, 0, 1, 1], [], []>} : vector<25x200xbf16>, vector<200x16xbf16>, vector<25x16xf32> -> vector<25x16xf32>
    %c0_5 = arith.constant 0 : index
    %c1 = arith.constant 1 : index
    %c0_6 = arith.constant 0 : index
    %c0_7 = arith.constant 0 : index
    %4 = vector.load %arg1[%c0_5, %c1, %c0_6, %c0_7] : memref<1x4x25x200xbf16, #tpu.memory_space<vmem>>, vector<1x1x25x200xbf16>
    %5 = vector.shape_cast %4 : vector<1x1x25x200xbf16> to vector<25x200xbf16>
    %cst_8 = arith.constant dense<0.000000e+00> : vector<25x16xf32>
    %6 = tpu.matmul %5, %0, %cst_8 {dimension_numbers = #tpu.dot_dimension_numbers<[1], [0], [0], [1], [0, 0, 1, 1], [], []>} : vector<25x200xbf16>, vector<200x16xbf16>, vector<25x16xf32> -> vector<25x16xf32>
    %7 = arith.maximumf %3, %6 : vector<25x16xf32>
    %c0_9 = arith.constant 0 : index
    %c2 = arith.constant 2 : index
    %c0_10 = arith.constant 0 : index
    %c0_11 = arith.constant 0 : index
    %8 = vector.load %arg1[%c0_9, %c2, %c0_10, %c0_11] : memref<1x4x25x200xbf16, #tpu.memory_space<vmem>>, vector<1x1x25x200xbf16>
    %9 = vector.shape_cast %8 : vector<1x1x25x200xbf16> to vector<25x200xbf16>
    %cst_12 = arith.constant dense<0.000000e+00> : vector<25x16xf32>
    %10 = tpu.matmul %9, %0, %cst_12 {dimension_numbers = #tpu.dot_dimension_numbers<[1], [0], [0], [1], [0, 0, 1, 1], [], []>} : vector<25x200xbf16>, vector<200x16xbf16>, vector<25x16xf32> -> vector<25x16xf32>
    %11 = arith.maximumf %7, %10 : vector<25x16xf32>
    %c0_13 = arith.constant 0 : index
    %c3 = arith.constant 3 : index
    %c0_14 = arith.constant 0 : index
    %c0_15 = arith.constant 0 : index
    %12 = vector.load %arg1[%c0_13, %c3, %c0_14, %c0_15] : memref<1x4x25x200xbf16, #tpu.memory_space<vmem>>, vector<1x1x25x200xbf16>
    %13 = vector.shape_cast %12 : vector<1x1x25x200xbf16> to vector<25x200xbf16>
    %cst_16 = arith.constant dense<0.000000e+00> : vector<25x16xf32>
    %14 = tpu.matmul %13, %0, %cst_16 {dimension_numbers = #tpu.dot_dimension_numbers<[1], [0], [0], [1], [0, 0, 1, 1], [], []>} : vector<25x200xbf16>, vector<200x16xbf16>, vector<25x16xf32> -> vector<25x16xf32>
    %15 = arith.maximumf %11, %14 : vector<25x16xf32>
    %c0_17 = arith.constant 0 : index
    %c0_18 = arith.constant 0 : index
    %16 = vector.load %arg3[%c0_17, %c0_18] : memref<1x16xf32, #tpu.memory_space<vmem>>, vector<1x16xf32>
    %17 = vector.broadcast %16 : vector<1x16xf32> to vector<25x16xf32>
    %18 = arith.addf %15, %17 : vector<25x16xf32>
    %cst_19 = arith.constant 0.000000e+00 : f32
    %19 = vector.broadcast %cst_19 : f32 to vector<25x16xf32>
    %20 = arith.maximumf %18, %19 : vector<25x16xf32>
    %21 = arith.truncf %20 : vector<25x16xf32> to vector<25x16xbf16>
    %c0_20 = arith.constant 0 : index
    %c0_21 = arith.constant 0 : index
    %c0_22 = arith.constant 0 : index
    %22 = vector.load %arg4[%c0_20, %c0_21, %c0_22] : memref<1x25x16xbf16, #tpu.memory_space<vmem>>, vector<1x25x16xbf16>
    %23 = vector.shape_cast %22 : vector<1x25x16xbf16> to vector<25x16xbf16>
    %24 = vector.shape_cast %21 : vector<25x16xbf16> to vector<1x25x16xbf16>
    tpu.vector_store %arg4[%c0_20, %c0_21, %c0_22], %24 {strides = array<i32>} : memref<1x25x16xbf16, #tpu.memory_space<vmem>>, vector<1x25x16xbf16>,
    return
  }
  func.func @transform_0(%arg0: i32) -> (i32, i32, i32, i32) {
    %c0_i32 = arith.constant 0 : i32
    %c0_i32_0 = arith.constant 0 : i32
    %c0_i32_1 = arith.constant 0 : i32
    %c0_i32_2 = arith.constant 0 : i32
    return %arg0, %c0_i32, %c0_i32_0, %c0_i32_1 : i32, i32, i32, i32
  }
  func.func @transform_1(%arg0: i32) -> (i32, i32) {
    %c0_i32 = arith.constant 0 : i32
    %c0_i32_0 = arith.constant 0 : i32
    %c0_i32_1 = arith.constant 0 : i32
    return %c0_i32, %c0_i32_0 : i32, i32
  }
  func.func @transform_2(%arg0: i32) -> (i32, i32) {
    %c0_i32 = arith.constant 0 : i32
    %c0_i32_0 = arith.constant 0 : i32
    %c0_i32_1 = arith.constant 0 : i32
    return %c0_i32, %c0_i32_0 : i32, i32
  }
  func.func @transform_3(%arg0: i32) -> (i32, i32, i32) {
    %c0_i32 = arith.constant 0 : i32
    %c0_i32_0 = arith.constant 0 : i32
    %c0_i32_1 = arith.constant 0 : i32
    return %arg0, %c0_i32, %c0_i32_0 : i32, i32, i32
  }
}

module attributes {stable_mosaic.version = 11 : i64} {
  func.func @_fc_chain_kernel(%arg0: i32, %arg1: memref<2x400xbf16, #tpu.memory_space<vmem>>, %arg2: memref<400x120xbf16, #tpu.memory_space<vmem>>, %arg3: memref<1x120xf32, #tpu.memory_space<vmem>>, %arg4: memref<120x84xbf16, #tpu.memory_space<vmem>>, %arg5: memref<1x84xf32, #tpu.memory_space<vmem>>, %arg6: memref<84x128xbf16, #tpu.memory_space<vmem>>, %arg7: memref<1x128xf32, #tpu.memory_space<vmem>>, %arg8: memref<2x128xf32, #tpu.memory_space<vmem>>) attributes {dimension_semantics = [#tpu.dimension_semantics<parallel>], iteration_bounds = array<i64: 1>, scalar_prefetch = 0 : i64, scratch_operands = 0 : i64, tpu.core_type = #tpu.core_type<tc>, window_params = [{transform_indices = @transform_0, window_bounds = array<i64: 2, 400>}, {pipeline_mode = #tpu.pipeline_mode<synchronous>, transform_indices = @transform_1, window_bounds = array<i64: 400, 120>}, {pipeline_mode = #tpu.pipeline_mode<synchronous>, transform_indices = @transform_2, window_bounds = array<i64: 1, 120>}, {pipeline_mode = #tpu.pipeline_mode<synchronous>, transform_indices = @transform_3, window_bounds = array<i64: 120, 84>}, {pipeline_mode = #tpu.pipeline_mode<synchronous>, transform_indices = @transform_4, window_bounds = array<i64: 1, 84>}, {pipeline_mode = #tpu.pipeline_mode<synchronous>, transform_indices = @transform_5, window_bounds = array<i64: 84, 128>}, {pipeline_mode = #tpu.pipeline_mode<synchronous>, transform_indices = @transform_6, window_bounds = array<i64: 1, 128>}, {transform_indices = @transform_7, window_bounds = array<i64: 2, 128>}]} {
    %c0 = arith.constant 0 : index
    %c0_0 = arith.constant 0 : index
    %0 = vector.load %arg1[%c0, %c0_0] : memref<2x400xbf16, #tpu.memory_space<vmem>>, vector<2x400xbf16>
    %c0_1 = arith.constant 0 : index
    %c0_2 = arith.constant 0 : index
    %1 = vector.load %arg2[%c0_1, %c0_2] : memref<400x120xbf16, #tpu.memory_space<vmem>>, vector<400x120xbf16>
    %cst = arith.constant dense<0.000000e+00> : vector<2x120xf32>
    %2 = tpu.matmul %0, %1, %cst {dimension_numbers = #tpu.dot_dimension_numbers<[1], [0], [0], [1], [0, 0, 1, 1], [], []>} : vector<2x400xbf16>, vector<400x120xbf16>, vector<2x120xf32> -> vector<2x120xf32>
    %c0_3 = arith.constant 0 : index
    %c0_4 = arith.constant 0 : index
    %3 = vector.load %arg3[%c0_3, %c0_4] : memref<1x120xf32, #tpu.memory_space<vmem>>, vector<1x120xf32>
    %4 = vector.broadcast %3 : vector<1x120xf32> to vector<2x120xf32>
    %5 = arith.addf %2, %4 : vector<2x120xf32>
    %cst_5 = arith.constant 0.000000e+00 : f32
    %6 = vector.broadcast %cst_5 : f32 to vector<2x120xf32>
    %7 = arith.maximumf %5, %6 : vector<2x120xf32>
    %8 = arith.truncf %7 : vector<2x120xf32> to vector<2x120xbf16>
    %c0_6 = arith.constant 0 : index
    %c0_7 = arith.constant 0 : index
    %9 = vector.load %arg4[%c0_6, %c0_7] : memref<120x84xbf16, #tpu.memory_space<vmem>>, vector<120x84xbf16>
    %cst_8 = arith.constant dense<0.000000e+00> : vector<2x84xf32>
    %10 = tpu.matmul %8, %9, %cst_8 {dimension_numbers = #tpu.dot_dimension_numbers<[1], [0], [0], [1], [0, 0, 1, 1], [], []>} : vector<2x120xbf16>, vector<120x84xbf16>, vector<2x84xf32> -> vector<2x84xf32>
    %c0_9 = arith.constant 0 : index
    %c0_10 = arith.constant 0 : index
    %11 = vector.load %arg5[%c0_9, %c0_10] : memref<1x84xf32, #tpu.memory_space<vmem>>, vector<1x84xf32>
    %12 = vector.broadcast %11 : vector<1x84xf32> to vector<2x84xf32>
    %13 = arith.addf %10, %12 : vector<2x84xf32>
    %cst_11 = arith.constant 0.000000e+00 : f32
    %14 = vector.broadcast %cst_11 : f32 to vector<2x84xf32>
    %15 = arith.maximumf %13, %14 : vector<2x84xf32>
    %16 = arith.truncf %15 : vector<2x84xf32> to vector<2x84xbf16>
    %c0_12 = arith.constant 0 : index
    %c0_13 = arith.constant 0 : index
    %17 = vector.load %arg6[%c0_12, %c0_13] : memref<84x128xbf16, #tpu.memory_space<vmem>>, vector<84x128xbf16>
    %cst_14 = arith.constant dense<0.000000e+00> : vector<2x128xf32>
    %18 = tpu.matmul %16, %17, %cst_14 {dimension_numbers = #tpu.dot_dimension_numbers<[1], [0], [0], [1], [0, 0, 1, 1], [], []>} : vector<2x84xbf16>, vector<84x128xbf16>, vector<2x128xf32> -> vector<2x128xf32>
    %c0_15 = arith.constant 0 : index
    %c0_16 = arith.constant 0 : index
    %19 = vector.load %arg7[%c0_15, %c0_16] : memref<1x128xf32, #tpu.memory_space<vmem>>, vector<1x128xf32>
    %20 = vector.broadcast %19 : vector<1x128xf32> to vector<2x128xf32>
    %21 = arith.addf %18, %20 : vector<2x128xf32>
    %c0_17 = arith.constant 0 : index
    %c0_18 = arith.constant 0 : index
    %22 = vector.load %arg8[%c0_17, %c0_18] : memref<2x128xf32, #tpu.memory_space<vmem>>, vector<2x128xf32>
    tpu.vector_store %arg8[%c0_17, %c0_18], %21 {strides = array<i32>} : memref<2x128xf32, #tpu.memory_space<vmem>>, vector<2x128xf32>,
    return
  }
  func.func @transform_0(%arg0: i32) -> (i32, i32) {
    %c0_i32 = arith.constant 0 : i32
    %c0_i32_0 = arith.constant 0 : i32
    return %arg0, %c0_i32 : i32, i32
  }
  func.func @transform_1(%arg0: i32) -> (i32, i32) {
    %c0_i32 = arith.constant 0 : i32
    %c0_i32_0 = arith.constant 0 : i32
    %c0_i32_1 = arith.constant 0 : i32
    return %c0_i32, %c0_i32_0 : i32, i32
  }
  func.func @transform_2(%arg0: i32) -> (i32, i32) {
    %c0_i32 = arith.constant 0 : i32
    %c0_i32_0 = arith.constant 0 : i32
    %c0_i32_1 = arith.constant 0 : i32
    return %c0_i32, %c0_i32_0 : i32, i32
  }
  func.func @transform_3(%arg0: i32) -> (i32, i32) {
    %c0_i32 = arith.constant 0 : i32
    %c0_i32_0 = arith.constant 0 : i32
    %c0_i32_1 = arith.constant 0 : i32
    return %c0_i32, %c0_i32_0 : i32, i32
  }
  func.func @transform_4(%arg0: i32) -> (i32, i32) {
    %c0_i32 = arith.constant 0 : i32
    %c0_i32_0 = arith.constant 0 : i32
    %c0_i32_1 = arith.constant 0 : i32
    return %c0_i32, %c0_i32_0 : i32, i32
  }
  func.func @transform_5(%arg0: i32) -> (i32, i32) {
    %c0_i32 = arith.constant 0 : i32
    %c0_i32_0 = arith.constant 0 : i32
    %c0_i32_1 = arith.constant 0 : i32
    return %c0_i32, %c0_i32_0 : i32, i32
  }
  func.func @transform_6(%arg0: i32) -> (i32, i32) {
    %c0_i32 = arith.constant 0 : i32
    %c0_i32_0 = arith.constant 0 : i32
    %c0_i32_1 = arith.constant 0 : i32
    return %c0_i32, %c0_i32_0 : i32, i32
  }
  func.func @transform_7(%arg0: i32) -> (i32, i32) {
    %c0_i32 = arith.constant 0 : i32
    %c0_i32_0 = arith.constant 0 : i32
    return %arg0, %c0_i32 : i32, i32
  }
}

</mosaic_0001>

<llo_original>
// kernel: net_forward.3
$region0: #{net_forward.3}
  #allocation0 [shape = 'u32[]', space=smem, size = 0x4, offset = 0x4, fixed_abs, tag = 'smem constant byte address 0x4 - core index']
  #allocation1 [shape = 'u32[144,128]{1,0:T(1,128)}', space=vmem, size = 0x12000, scoped, tag = 'internal scratch']
  %s0 = inlined_call_operand.vmem [shape: bf16[2,4,196,75], index: 0, kind: input, shape index: {}]
  %s1 = inlined_call_operand.vmem [shape: bf16[75,8], index: 1, kind: input, shape index: {}]
  %s2 = inlined_call_operand.vmem [shape: f32[1,8], index: 2, kind: input, shape index: {}]
  %s3 = inlined_call_operand.vmem [shape: bf16[2,196,8], index: 3, kind: output, shape index: {}]
  %s4 = sld [smem:[#allocation0]]
  $region45: #{net_forward.3} parent=0
    _
  %s6 = ssub.s32 1, %s4
  %s7 = scalar_select 0, %s6, %s4
  loop: start=0, step=1, limit=4
  $region2: #{net_forward.3} parent=0 // loop_pre_header
    _
  $region3: #{net_forward.3} parent=0 // loop_header
    %s9 = sphi 0, %s13
    %p10 = scmp.ge.s32.totalorder %s9, 4
    %s19 = sphi 0, %s21
    %s22 = sphi 0, %s19
    %s23 = sphi 0, %s22
    %s39 = sphi 0, %s23
    %s43 = sphi 0, %s43
    %s45 = sphi 0, %s43
    %s46 = sphi 0, %s45
    %s60 = sphi 0, %s46
    %s64 = sphi 0, %s64
    %s66 = sphi 0, %s64
    %s67 = sphi 0, %s66
    %s81 = sphi 0, %s67
    %s87 = sphi 0, %s89
    %s90 = sphi 0, %s87
    %s91 = sphi 0, %s90
    %s107 = sphi 0, %s91
  $region4: #{net_forward.3} parent=0 // loop_header_branch
    %12 = sbr.rel (%p10) target = $region8
  $region5: #{net_forward.3} parent=0 // loop_body
    %s14 = ssub.s32 %s9, 1
    %s15 = ssub.s32 %s9, 2
    %s16 = sadd.s32 %s9, 1
    %s17 = ssub.s32 %s9, %s16
    %p18 = scmp.eq.s32.totalorder %s17, 0
    %s20 = sadd.s32 %s19, 1
    %s21 = scalar_select %p18, %s19, %s20
    %p24 = pneg %p18
    %p25 = scmp.eq.s32.totalorder %s9, 1
    %p26 = por %p24, %p25
    %p27 = scmp.ne.s32.totalorder %s19, %s22
    %p28 = scmp.eq.s32.totalorder %s9, 0
    %p29 = por %p27, %p28
    %p30 = scmp.ne.s32.totalorder %s19, %s22
    %p31 = scmp.eq.s32.totalorder %s14, 1
    %p32 = por %p30, %p31
    %p33 = scmp.ne.s32.totalorder %s22, %s23
    %p34 = scmp.eq.s32.totalorder %s14, 0
    %p35 = por %p33, %p34
    %p36 = scmp.ne.s32.totalorder %s22, %s23
    %p37 = scmp.eq.s32.totalorder %s15, 1
    %p38 = por %p36, %p37
    %p40 = scmp.ne.s32.totalorder %s23, %s39
    %p41 = scmp.eq.s32.totalorder %s15, 0
    %p42 = por %p40, %p41
    %s44 = sadd.s32 %s43, 1
    %p47 = scmp.eq.s32.totalorder %s9, 1
    %p48 = scmp.ne.s32.totalorder %s43, %s45
    %p49 = scmp.eq.s32.totalorder %s9, 0
    %p50 = por %p48, %p49
    %p51 = scmp.ne.s32.totalorder %s43, %s45
    %p52 = scmp.eq.s32.totalorder %s14, 1
    %p53 = por %p51, %p52
    %p54 = scmp.ne.s32.totalorder %s45, %s46
    %p55 = scmp.eq.s32.totalorder %s14, 0
    %p56 = por %p54, %p55
    %p57 = scmp.ne.s32.totalorder %s45, %s46
    %p58 = scmp.eq.s32.totalorder %s15, 1
    %p59 = por %p57, %p58
    %p61 = scmp.ne.s32.totalorder %s46, %s60
    %p62 = scmp.eq.s32.totalorder %s15, 0
    %p63 = por %p61, %p62
    %s65 = sadd.s32 %s64, 1
    %p68 = scmp.eq.s32.totalorder %s9, 1
    %p69 = scmp.ne.s32.totalorder %s64, %s66
    %p70 = scmp.eq.s32.totalorder %s9, 0
    %p71 = por %p69, %p70
    %p72 = scmp.ne.s32.totalorder %s64, %s66
    %p73 = scmp.eq.s32.totalorder %s14, 1
    %p74 = por %p72, %p73
    %p75 = scmp.ne.s32.totalorder %s66, %s67
    %p76 = scmp.eq.s32.totalorder %s14, 0
    %p77 = por %p75, %p76
    %p78 = scmp.ne.s32.totalorder %s66, %s67
    %p79 = scmp.eq.s32.totalorder %s15, 1
    %p80 = por %p78, %p79
    %p82 = scmp.ne.s32.totalorder %s67, %s81
    %p83 = scmp.eq.s32.totalorder %s15, 0
    %p84 = por %p82, %p83
    %s85 = ssub.s32 %s9, %s16
    %p86 = scmp.eq.s32.totalorder %s85, 0
    %s88 = sadd.s32 %s87, 1
    %s89 = scalar_select %p86, %s87, %s88
    %p92 = pneg %p86
    %p93 = scmp.eq.s32.totalorder %s9, 1
    %p94 = por %p92, %p93
    %p95 = scmp.ne.s32.totalorder %s87, %s90
    %p96 = scmp.eq.s32.totalorder %s9, 0
    %p97 = por %p95, %p96
    %p98 = scmp.ne.s32.totalorder %s87, %s90
    %p99 = scmp.eq.s32.totalorder %s14, 1
    %p100 = por %p98, %p99
    %p101 = scmp.ne.s32.totalorder %s90, %s91
    %p102 = scmp.eq.s32.totalorder %s14, 0
    %p103 = por %p101, %p102
    %p104 = scmp.ne.s32.totalorder %s90, %s91
    %p105 = scmp.eq.s32.totalorder %s15, 1
    %p106 = por %p104, %p105
    %p108 = scmp.ne.s32.totalorder %s91, %s107
    %p109 = scmp.eq.s32.totalorder %s15, 0
    %p110 = por %p108, %p109
    %p111 = scmp.le.s32.totalorder 1, %s9
    %p112 = scmp.lt.s32.totalorder %s9, 3
    %p113 = pnand %p111, %p112
    %p114 = pneg %p113
    // Predicated region
    $region9: #{net_forward.3} parent=5 // pred_check
      _
    $region10: #{net_forward.3} parent=5 // pred_check_branch
      %116 = sbr.rel (%p113) target = $region12
    $region11: #{net_forward.3} parent=5 // pred_region
      %s117 = ssub.s32 %s9, 1
      // Predicated region
      $region13: #{net_forward.3} parent=11 // pred_check
        %p118 = pneg %p56
      $region14: #{net_forward.3} parent=11 // pred_check_branch
        %120 = sbr.rel (%p118) target = $region16
      $region15: #{net_forward.3} parent=11 // pred_region
        _
      $region16: #{net_forward.3} parent=11 // pred_fallthru
        _
      // Predicated region
      $region17: #{net_forward.3} parent=11 // pred_check
        %p121 = pneg %p77
      $region18: #{net_forward.3} parent=11 // pred_check_branch
        %123 = sbr.rel (%p121) target = $region20
      $region19: #{net_forward.3} parent=11 // pred_region
        _
      $region20: #{net_forward.3} parent=11 // pred_fallthru
        _
    $region12: #{net_forward.3} parent=5 // pred_fallthru
      _
    %p124 = scmp.lt.s32.totalorder %s9, 2
    // Predicated region
    $region21: #{net_forward.3} parent=5 // pred_check
      %p125 = pneg %p124
    $region22: #{net_forward.3} parent=5 // pred_check_branch
      %127 = sbr.rel (%p125) target = $region24
    $region23: #{net_forward.3} parent=5 // pred_region
      // Predicated region
      $region25: #{net_forward.3} parent=23 // pred_check
        %p128 = pneg %p29
      $region26: #{net_forward.3} parent=23 // pred_check_branch
        %130 = sbr.rel (%p128) target = $region28
      $region27: #{net_forward.3} parent=23 // pred_region
        %p131 = scmp.lt.s32.totalorder %s9, 1
        %s132 = scalar_select %p131, %s9, 1
        %s133 = smul.addr %s132, 100
        %s134 = smul.addr %s133, 4
        %s135 = scalar_lea.vmem %s0, %s134
      $region28: #{net_forward.3} parent=23 // pred_fallthru
        _
    $region24: #{net_forward.3} parent=5 // pred_fallthru
      _
    %p136 = scmp.le.s32.totalorder 1, %s9
    %p137 = scmp.lt.s32.totalorder %s9, 3
    %p138 = pnand %p136, %p137
    %p139 = pneg %p138
    // Predicated region
    $region29: #{net_forward.3} parent=5 // pred_check
      _
    $region30: #{net_forward.3} parent=5 // pred_check_branch
      %141 = sbr.rel (%p138) target = $region32
    $region31: #{net_forward.3} parent=5 // pred_region
      %s142 = ssub.s32 %s9, 1
      %p143 = scmp.lt.s32.totalorder %s14, 1
      %s144 = scalar_select %p143, %s14, 1
      %s145 = smul.addr %s144, 100
      %s146 = smul.addr %s145, 4
      %s147 = scalar_lea.vmem %s0, %s146
      %p148 = pneg %p35
      %p149 = pneg %p32
      %p150 = pneg %p56
      %p151 = pneg %p53
      %p152 = pneg %p77
      %p153 = pneg %p74
      %p154 = pneg %p103
      %p155 = pneg %p100
      %p156 = scmp.lt.s32.totalorder %s14, 1
      %s157 = scalar_select %p156, %s14, 1
      %s158 = smul.addr %s157, 25
      %s159 = smul.addr %s158, 4
      %s160 = scalar_lea.vmem %s3, %s159
      %p161 = scmp.lt.s32.totalorder %s14, 1
      %s162 = scalar_select %p161, %s14, 1
      %s163 = smul.addr %s162, 100
      %s164 = smul.addr %s163, 4
      %s165 = scalar_lea.vmem %s0, %s164
      %p166 = scmp.lt.s32.totalorder %s14, 1
      %s167 = scalar_select %p166, %s14, 1
      %s168 = smul.addr %s167, 25
      %s169 = smul.addr %s168, 4
      %s170 = scalar_lea.vmem %s3, %s169
      %v172 = vld [vmem:[%s1] sm:$0xf]
      %v173 = vld [vmem:[%s1 + $0x4] sm:$0xf]
      %v174 = vld [vmem:[%s1 + $0x8] sm:$0xf]
      %v175 = vld [vmem:[%s1 + $0xc] sm:$0xf]
      %v176 = vld [vmem:[%s1 + $0x10] sm:$0xf]
      %v177 = vld [vmem:[%s1 + $0x14] sm:$0xf]
      %v178 = vld [vmem:[%s1 + $0x18] sm:$0xf]
      %v179 = vld [vmem:[%s1 + $0x1c] sm:$0xf]
      %v180 = vld [vmem:[%s1 + $0x20] sm:$0xf]
      %v181 = vld [vmem:[%s1 + $0x24] sm:$0x3]
      %v182 = vld [vmem:[%s165] sm:$0xf]
      %v183 = vld [vmem:[%s165 + $0x4] sm:$0xf]
      %v184 = vld [vmem:[%s165 + $0x8] sm:$0xf]
      %v185 = vld [vmem:[%s165 + $0xc] sm:$0xf]
      %v186 = vld [vmem:[%s165 + $0x10] sm:$0xf]
      %v187 = vld [vmem:[%s165 + $0x14] sm:$0xf]
      %v188 = vld [vmem:[%s165 + $0x18] sm:$0xf]
      %v189 = vld [vmem:[%s165 + $0x1c] sm:$0xf]
      %v190 = vld [vmem:[%s165 + $0x20] sm:$0xf]
      %v191 = vld [vmem:[%s165 + $0x24] sm:$0xf]
      %v192 = vld [vmem:[%s165 + $0x28] sm:$0xf]
      %v193 = vld [vmem:[%s165 + $0x2c] sm:$0xf]
      %v194 = vld [vmem:[%s165 + $0x30] sm:$0xf]
      %v195 = vld [vmem:[%s165 + $0x34] sm:$0xf]
      %v196 = vld [vmem:[%s165 + $0x38] sm:$0xf]
      %v197 = vld [vmem:[%s165 + $0x3c] sm:$0xf]
      %v198 = vld [vmem:[%s165 + $0x40] sm:$0xf]
      %v199 = vld [vmem:[%s165 + $0x44] sm:$0xf]
      %v200 = vld [vmem:[%s165 + $0x48] sm:$0xf]
      %v201 = vld [vmem:[%s165 + $0x4c] sm:$0xf]
      %v202 = vld [vmem:[%s165 + $0x50] sm:$0xf]
      %v203 = vld [vmem:[%s165 + $0x54] sm:$0xf]
      %v204 = vld [vmem:[%s165 + $0x58] sm:$0xf]
      %v205 = vld [vmem:[%s165 + $0x5c] sm:$0xf]
      %v206 = vld [vmem:[%s165 + $0x60] sm:$0x3]
      %v232 = vunpack.c.l.b16 %v182
      %v233 = vunpack.c.l.b16 %v183
      %v234 = vunpack.c.l.b16 %v184
      %v235 = vunpack.c.l.b16 %v185
      %v236 = vunpack.c.l.b16 %v186
      %v237 = vunpack.c.l.b16 %v187
      %v238 = vunpack.c.l.b16 %v188
      %v239 = vunpack.c.l.b16 %v189
      %v240 = vunpack.c.l.b16 %v190
      %v241 = vunpack.c.l.b16 %v191
      %v242 = vunpack.c.l.b16 %v192
      %v243 = vunpack.c.l.b16 %v193
      %v244 = vunpack.c.l.b16 %v194
      %v245 = vunpack.c.l.b16 %v195
      %v246 = vunpack.c.l.b16 %v196
      %v247 = vunpack.c.l.b16 %v197
      %v248 = vunpack.c.l.b16 %v198
      %v249 = vunpack.c.l.b16 %v199
      %v250 = vunpack.c.l.b16 %v200
      %v251 = vunpack.c.l.b16 %v201
      %v252 = vunpack.c.l.b16 %v202
      %v253 = vunpack.c.l.b16 %v203
      %v254 = vunpack.c.l.b16 %v204
      %v255 = vunpack.c.l.b16 %v205
      %v256 = vunpack.c.l.b16 %v206
      %v257 = vpack.c.b16 %v233, %v232
      %v258 = vpack.c.b16 %v235, %v234
      %v259 = vpack.c.b16 %v237, %v236
      %v260 = vpack.c.b16 %v239, %v238
      %v261 = vpack.c.b16 %v241, %v240
      %v262 = vpack.c.b16 %v243, %v242
      %v263 = vpack.c.b16 %v245, %v244
      %v264 = vpack.c.b16 %v247, %v246
      %v265 = vpack.c.b16 %v249, %v248
      %v266 = vpack.c.b16 %v251, %v250
      %v267 = vpack.c.b16 %v253, %v252
      %v268 = vpack.c.b16 %v255, %v254
      %v269 = vpack.c.b16 %v256, %v256
      %v280 = vunpack.c.l.b16 %v172
      %v281 = vunpack.c.l.b16 %v173
      %v282 = vunpack.c.l.b16 %v174
      %v283 = vunpack.c.l.b16 %v175
      %v284 = vunpack.c.l.b16 %v176
      %v285 = vunpack.c.l.b16 %v177
      %v286 = vunpack.c.l.b16 %v178
      %v287 = vunpack.c.l.b16 %v179
      %v288 = vunpack.c.l.b16 %v180
      %v289 = vunpack.c.l.b16 %v181
      %v290 = vpack.c.b16 %v281, %v280
      %v291 = vpack.c.b16 %v283, %v282
      %v292 = vpack.c.b16 %v285, %v284
      %v293 = vpack.c.b16 %v287, %v286
      %v294 = vpack.c.b16 %v289, %v288
      %vm299 = vcmask 613376
      %v301 = vsel %vm299, %v257, 0
      %v304 = vsel %vm299, %v258, 0
      %v307 = vsel %vm299, %v259, 0
      %v310 = vsel %vm299, %v260, 0
      %v313 = vsel %vm299, %v261, 0
      %v316 = vsel %vm299, %v262, 0
      %v319 = vsel %vm299, %v263, 0
      %v322 = vsel %vm299, %v264, 0
      %v325 = vsel %vm299, %v265, 0
      %v328 = vsel %vm299, %v266, 0
      %v331 = vsel %vm299, %v267, 0
      %v334 = vsel %vm299, %v268, 0
      %v337 = vsel %vm299, %v269, 0
      %vm339 = vcmask 1044480
      %vm340 = vcmask 1045504
      %v341 = vsel %vm339, 4294967295, 65535
      %v342 = vsel %vm340, %v341, 0
      %v344 = vand.u32 %v294, %v342
      %346 = vmatprep.subr.bf16.mxu0 0
      %347 = vmatpush1.bf16.msra.mxu0 0
      %348 = vmatprep.subr.bf16.mxu0 0
      %349 = vmatpush1.bf16.msra.mxu0 0
      %350 = vmatprep.subr.bf16.mxu0 0
      %351 = vmatpush1.bf16.msra.mxu0 0
      %352 = vmatprep.subr.bf16.mxu0 0
      %353 = vmatpush1.bf16.msra.mxu0 %v344
      %354 = vmatprep.subr.bf16.mxu0 0
      %355 = vmatpush1.bf16.msra.mxu0 %v293
      %356 = vmatprep.subr.bf16.mxu0 0
      %357 = vmatpush1.bf16.msra.mxu0 %v292
      %358 = vmatprep.subr.bf16.mxu0 0
      %359 = vmatpush1.bf16.msra.mxu0 %v291
      %360 = vmatprep.subr.bf16.mxu0 0
      %361 = vmatpush1.bf16.msra.mxu0 %v290
      %362 = vmatprep.subr.bf16.mxu0 0
      %363 = vmatpush2.bf16.msra.mxu0 0
      %364 = vmatprep.subr.bf16.mxu0 0
      %365 = vmatpush2.bf16.msra.mxu0 0
      %366 = vmatprep.subr.bf16.mxu0 0
      %367 = vmatpush2.bf16.msra.mxu0 0
      %368 = vmatprep.subr.bf16.mxu0 0
      %369 = vmatpush2.bf16.msra.mxu0 0
      %370 = vmatprep.subr.bf16.mxu0 0
      %371 = vmatpush2.bf16.msra.mxu0 0
      %372 = vmatprep.subr.bf16.mxu0 0
      %373 = vmatpush2.bf16.msra.mxu0 0
      %374 = vmatprep.subr.bf16.mxu0 0
      %375 = vmatpush2.bf16.msra.mxu0 0
      %376 = vmatprep.subr.bf16.mxu0 0
      %377 = vmatpush2.bf16.msra.mxu0 0
      %378 = vmatprep.mubr.bf16.mxu0 0
      %379 = vmatmul.mubr.bf16.gmra.mxu0 %v301
      %v380 = vpop.f32.mrf.mxu0
      %v381 = vadd.f32 0.0, %v380
      %v382 = vpop.f32.mrf.mxu0
      %v383 = vpop.f32.mrf.mxu0
      %v384 = vadd.f32 0.0, %v383
      %v385 = vpop.f32.mrf.mxu0
      %386 = vmatprep.mubr.bf16.mxu0 0
      %387 = vmatmul.mubr.bf16.gmra.mxu0 %v304
      %v388 = vpop.f32.mrf.mxu0
      %v389 = vadd.f32 0.0, %v388
      %v390 = vpop.f32.mrf.mxu0
      %v391 = vpop.f32.mrf.mxu0
      %v392 = vadd.f32 0.0, %v391
      %v393 = vpop.f32.mrf.mxu0
      %394 = vmatprep.mubr.bf16.mxu0 0
      %395 = vmatmul.mubr.bf16.gmra.mxu0 %v307
      %v396 = vpop.f32.mrf.mxu0
      %v397 = vadd.f32 0.0, %v396
      %v398 = vpop.f32.mrf.mxu0
      %v399 = vpop.f32.mrf.mxu0
      %v400 = vadd.f32 0.0, %v399
      %v401 = vpop.f32.mrf.mxu0
      %402 = vmatprep.mubr.bf16.mxu0 0
      %403 = vmatmul.mubr.bf16.gmra.mxu0 %v310
      %v404 = vpop.f32.mrf.mxu0
      %v405 = vadd.f32 0.0, %v404
      %v406 = vpop.f32.mrf.mxu0
      %v407 = vpop.f32.mrf.mxu0
      %v408 = vadd.f32 0.0, %v407
      %v409 = vpop.f32.mrf.mxu0
      %410 = vmatprep.mubr.bf16.mxu0 0
      %411 = vmatmul.mubr.bf16.gmra.mxu0 %v313
      %v412 = vpop.f32.mrf.mxu0
      %v413 = vadd.f32 0.0, %v412
      %v414 = vpop.f32.mrf.mxu0
      %v415 = vpop.f32.mrf.mxu0
      %v416 = vadd.f32 0.0, %v415
      %v417 = vpop.f32.mrf.mxu0
      %418 = vmatprep.mubr.bf16.mxu0 0
      %419 = vmatmul.mubr.bf16.gmra.mxu0 %v316
      %v420 = vpop.f32.mrf.mxu0
      %v421 = vadd.f32 0.0, %v420
      %v422 = vpop.f32.mrf.mxu0
      %v423 = vpop.f32.mrf.mxu0
      %v424 = vadd.f32 0.0, %v423
      %v425 = vpop.f32.mrf.mxu0
      %426 = vmatprep.mubr.bf16.mxu0 0
      %427 = vmatmul.mubr.bf16.gmra.mxu0 %v319
      %v428 = vpop.f32.mrf.mxu0
      %v429 = vadd.f32 0.0, %v428
      %v430 = vpop.f32.mrf.mxu0
      %v431 = vpop.f32.mrf.mxu0
      %v432 = vadd.f32 0.0, %v431
      %v433 = vpop.f32.mrf.mxu0
      %434 = vmatprep.mubr.bf16.mxu0 0
      %435 = vmatmul.mubr.bf16.gmra.mxu0 %v322
      %v436 = vpop.f32.mrf.mxu0
      %v437 = vadd.f32 0.0, %v436
      %v438 = vpop.f32.mrf.mxu0
      %v439 = vpop.f32.mrf.mxu0
      %v440 = vadd.f32 0.0, %v439
      %v441 = vpop.f32.mrf.mxu0
      %442 = vmatprep.mubr.bf16.mxu0 0
      %443 = vmatmul.mubr.bf16.gmra.mxu0 %v325
      %v444 = vpop.f32.mrf.mxu0
      %v445 = vadd.f32 0.0, %v444
      %v446 = vpop.f32.mrf.mxu0
      %v447 = vpop.f32.mrf.mxu0
      %v448 = vadd.f32 0.0, %v447
      %v449 = vpop.f32.mrf.mxu0
      %450 = vmatprep.mubr.bf16.mxu0 0
      %451 = vmatmul.mubr.bf16.gmra.mxu0 %v328
      %v452 = vpop.f32.mrf.mxu0
      %v453 = vadd.f32 0.0, %v452
      %v454 = vpop.f32.mrf.mxu0
      %v455 = vpop.f32.mrf.mxu0
      %v456 = vadd.f32 0.0, %v455
      %v457 = vpop.f32.mrf.mxu0
      %458 = vmatprep.mubr.bf16.mxu0 0
      %459 = vmatmul.mubr.bf16.gmra.mxu0 %v331
      %v460 = vpop.f32.mrf.mxu0
      %v461 = vadd.f32 0.0, %v460
      %v462 = vpop.f32.mrf.mxu0
      %v463 = vpop.f32.mrf.mxu0
      %v464 = vadd.f32 0.0, %v463
      %v465 = vpop.f32.mrf.mxu0
      %466 = vmatprep.mubr.bf16.mxu0 0
      %467 = vmatmul.mubr.bf16.gmra.mxu0 %v334
      %v468 = vpop.f32.mrf.mxu0
      %v469 = vadd.f32 0.0, %v468
      %v470 = vpop.f32.mrf.mxu0
      %v471 = vpop.f32.mrf.mxu0
      %v472 = vadd.f32 0.0, %v471
      %v473 = vpop.f32.mrf.mxu0
      %474 = vmatprep.mubr.bf16.mxu0 0
      %475 = vmatmul.mubr.bf16.gmra.mxu0 %v337
      %v476 = vpop.f32.mrf.mxu0
      %v477 = vadd.f32 0.0, %v476
      %v478 = vpop.f32.mrf.mxu0
      %v479 = vpop.f32.mrf.mxu0
      %v480 = vpop.f32.mrf.mxu0
      %481 = vdwg.mxu0
      %s482 = scalar_lea.vmem %s165, 100
      %v483 = vld [vmem:[%s482] sm:$0xf]
      %v484 = vld [vmem:[%s482 + $0x4] sm:$0xf]
      %v485 = vld [vmem:[%s482 + $0x8] sm:$0xf]
      %v486 = vld [vmem:[%s482 + $0xc] sm:$0xf]
      %v487 = vld [vmem:[%s482 + $0x10] sm:$0xf]
      %v488 = vld [vmem:[%s482 + $0x14] sm:$0xf]
      %v489 = vld [vmem:[%s482 + $0x18] sm:$0xf]
      %v490 = vld [vmem:[%s482 + $0x1c] sm:$0xf]
      %v491 = vld [vmem:[%s482 + $0x20] sm:$0xf]
      %v492 = vld [vmem:[%s482 + $0x24] sm:$0xf]
      %v493 = vld [vmem:[%s482 + $0x28] sm:$0xf]
      %v494 = vld [vmem:[%s482 + $0x2c] sm:$0xf]
      %v495 = vld [vmem:[%s482 + $0x30] sm:$0xf]
      %v496 = vld [vmem:[%s482 + $0x34] sm:$0xf]
      %v497 = vld [vmem:[%s482 + $0x38] sm:$0xf]
      %v498 = vld [vmem:[%s482 + $0x3c] sm:$0xf]
      %v499 = vld [vmem:[%s482 + $0x40] sm:$0xf]
      %v500 = vld [vmem:[%s482 + $0x44] sm:$0xf]
      %v501 = vld [vmem:[%s482 + $0x48] sm:$0xf]
      %v502 = vld [vmem:[%s482 + $0x4c] sm:$0xf]
      %v503 = vld [vmem:[%s482 + $0x50] sm:$0xf]
      %v504 = vld [vmem:[%s482 + $0x54] sm:$0xf]
      %v505 = vld [vmem:[%s482 + $0x58] sm:$0xf]
      %v506 = vld [vmem:[%s482 + $0x5c] sm:$0xf]
      %v507 = vld [vmem:[%s482 + $0x60] sm:$0x3]
      %v533 = vunpack.c.l.b16 %v483
      %v534 = vunpack.c.l.b16 %v484
      %v535 = vunpack.c.l.b16 %v485
      %v536 = vunpack.c.l.b16 %v486
      %v537 = vunpack.c.l.b16 %v487
      %v538 = vunpack.c.l.b16 %v488
      %v539 = vunpack.c.l.b16 %v489
      %v540 = vunpack.c.l.b16 %v490
      %v541 = vunpack.c.l.b16 %v491
      %v542 = vunpack.c.l.b16 %v492
      %v543 = vunpack.c.l.b16 %v493
      %v544 = vunpack.c.l.b16 %v494
      %v545 = vunpack.c.l.b16 %v495
      %v546 = vunpack.c.l.b16 %v496
      %v547 = vunpack.c.l.b16 %v497
      %v548 = vunpack.c.l.b16 %v498
      %v549 = vunpack.c.l.b16 %v499
      %v550 = vunpack.c.l.b16 %v500
      %v551 = vunpack.c.l.b16 %v501
      %v552 = vunpack.c.l.b16 %v502
      %v553 = vunpack.c.l.b16 %v503
      %v554 = vunpack.c.l.b16 %v504
      %v555 = vunpack.c.l.b16 %v505
      %v556 = vunpack.c.l.b16 %v506
      %v557 = vunpack.c.l.b16 %v507
      %v558 = vpack.c.b16 %v534, %v533
      %v559 = vpack.c.b16 %v536, %v535
      %v560 = vpack.c.b16 %v538, %v537
      %v561 = vpack.c.b16 %v540, %v539
      %v562 = vpack.c.b16 %v542, %v541
      %v563 = vpack.c.b16 %v544, %v543
      %v564 = vpack.c.b16 %v546, %v545
      %v565 = vpack.c.b16 %v548, %v547
      %v566 = vpack.c.b16 %v550, %v549
      %v567 = vpack.c.b16 %v552, %v551
      %v568 = vpack.c.b16 %v554, %v553
      %v569 = vpack.c.b16 %v556, %v555
      %v570 = vpack.c.b16 %v557, %v557
      %v572 = vsel %vm299, %v558, 0
      %v575 = vsel %vm299, %v559, 0
      %v578 = vsel %vm299, %v560, 0
      %v581 = vsel %vm299, %v561, 0
      %v584 = vsel %vm299, %v562, 0
      %v587 = vsel %vm299, %v563, 0
      %v590 = vsel %vm299, %v564, 0
      %v593 = vsel %vm299, %v565, 0
      %v596 = vsel %vm299, %v566, 0
      %v599 = vsel %vm299, %v567, 0
      %v602 = vsel %vm299, %v568, 0
      %v605 = vsel %vm299, %v569, 0
      %v608 = vsel %vm299, %v570, 0
      %610 = vmatprep.subr.bf16.mxu0 0
      %611 = vmatpush1.bf16.msra.mxu0 0
      %612 = vmatprep.subr.bf16.mxu0 0
      %613 = vmatpush1.bf16.msra.mxu0 0
      %614 = vmatprep.subr.bf16.mxu0 0
      %615 = vmatpush1.bf16.msra.mxu0 0
      %616 = vmatprep.subr.bf16.mxu0 0
      %617 = vmatpush1.bf16.msra.mxu0 %v344
      %618 = vmatprep.subr.bf16.mxu0 0
      %619 = vmatpush1.bf16.msra.mxu0 %v293
      %620 = vmatprep.subr.bf16.mxu0 0
      %621 = vmatpush1.bf16.msra.mxu0 %v292
      %622 = vmatprep.subr.bf16.mxu0 0
      %623 = vmatpush1.bf16.msra.mxu0 %v291
      %624 = vmatprep.subr.bf16.mxu0 0
      %625 = vmatpush1.bf16.msra.mxu0 %v290
      %626 = vmatprep.subr.bf16.mxu0 0
      %627 = vmatpush2.bf16.msra.mxu0 0
      %628 = vmatprep.subr.bf16.mxu0 0
      %629 = vmatpush2.bf16.msra.mxu0 0
      %630 = vmatprep.subr.bf16.mxu0 0
      %631 = vmatpush2.bf16.msra.mxu0 0
      %632 = vmatprep.subr.bf16.mxu0 0
      %633 = vmatpush2.bf16.msra.mxu0 0
      %634 = vmatprep.subr.bf16.mxu0 0
      %635 = vmatpush2.bf16.msra.mxu0 0
      %636 = vmatprep.subr.bf16.mxu0 0
      %637 = vmatpush2.bf16.msra.mxu0 0
      %638 = vmatprep.subr.bf16.mxu0 0
      %639 = vmatpush2.bf16.msra.mxu0 0
      %640 = vmatprep.subr.bf16.mxu0 0
      %641 = vmatpush2.bf16.msra.mxu0 0
      %642 = vmatprep.mubr.bf16.mxu0 0
      %643 = vmatmul.mubr.bf16.gmra.mxu0 %v572
      %v644 = vpop.f32.mrf.mxu0
      %v645 = vadd.f32 0.0, %v644
      %v646 = vpop.f32.mrf.mxu0
      %v647 = vpop.f32.mrf.mxu0
      %v648 = vadd.f32 0.0, %v647
      %v649 = vpop.f32.mrf.mxu0
      %650 = vmatprep.mubr.bf16.mxu0 0
      %651 = vmatmul.mubr.bf16.gmra.mxu0 %v575
      %v652 = vpop.f32.mrf.mxu0
      %v653 = vadd.f32 0.0, %v652
      %v654 = vpop.f32.mrf.mxu0
      %v655 = vpop.f32.mrf.mxu0
      %v656 = vadd.f32 0.0, %v655
      %v657 = vpop.f32.mrf.mxu0
      %658 = vmatprep.mubr.bf16.mxu0 0
      %659 = vmatmul.mubr.bf16.gmra.mxu0 %v578
      %v660 = vpop.f32.mrf.mxu0
      %v661 = vadd.f32 0.0, %v660
      %v662 = vpop.f32.mrf.mxu0
      %v663 = vpop.f32.mrf.mxu0
      %v664 = vadd.f32 0.0, %v663
      %v665 = vpop.f32.mrf.mxu0
      %666 = vmatprep.mubr.bf16.mxu0 0
      %667 = vmatmul.mubr.bf16.gmra.mxu0 %v581
      %v668 = vpop.f32.mrf.mxu0
      %v669 = vadd.f32 0.0, %v668
      %v670 = vpop.f32.mrf.mxu0
      %v671 = vpop.f32.mrf.mxu0
      %v672 = vadd.f32 0.0, %v671
      %v673 = vpop.f32.mrf.mxu0
      %674 = vmatprep.mubr.bf16.mxu0 0
      %675 = vmatmul.mubr.bf16.gmra.mxu0 %v584
      %v676 = vpop.f32.mrf.mxu0
      %v677 = vadd.f32 0.0, %v676
      %v678 = vpop.f32.mrf.mxu0
      %v679 = vpop.f32.mrf.mxu0
      %v680 = vadd.f32 0.0, %v679
      %v681 = vpop.f32.mrf.mxu0
      %682 = vmatprep.mubr.bf16.mxu0 0
      %683 = vmatmul.mubr.bf16.gmra.mxu0 %v587
      %v684 = vpop.f32.mrf.mxu0
      %v685 = vadd.f32 0.0, %v684
      %v686 = vpop.f32.mrf.mxu0
      %v687 = vpop.f32.mrf.mxu0
      %v688 = vadd.f32 0.0, %v687
      %v689 = vpop.f32.mrf.mxu0
      %690 = vmatprep.mubr.bf16.mxu0 0
      %691 = vmatmul.mubr.bf16.gmra.mxu0 %v590
      %v692 = vpop.f32.mrf.mxu0
      %v693 = vadd.f32 0.0, %v692
      %v694 = vpop.f32.mrf.mxu0
      %v695 = vpop.f32.mrf.mxu0
      %v696 = vadd.f32 0.0, %v695
      %v697 = vpop.f32.mrf.mxu0
      %698 = vmatprep.mubr.bf16.mxu0 0
      %699 = vmatmul.mubr.bf16.gmra.mxu0 %v593
      %v700 = vpop.f32.mrf.mxu0
      %v701 = vadd.f32 0.0, %v700
      %v702 = vpop.f32.mrf.mxu0
      %v703 = vpop.f32.mrf.mxu0
      %v704 = vadd.f32 0.0, %v703
      %v705 = vpop.f32.mrf.mxu0
      %706 = vmatprep.mubr.bf16.mxu0 0
      %707 = vmatmul.mubr.bf16.gmra.mxu0 %v596
      %v708 = vpop.f32.mrf.mxu0
      %v709 = vadd.f32 0.0, %v708
      %v710 = vpop.f32.mrf.mxu0
      %v711 = vpop.f32.mrf.mxu0
      %v712 = vadd.f32 0.0, %v711
      %v713 = vpop.f32.mrf.mxu0
      %714 = vmatprep.mubr.bf16.mxu0 0
      %715 = vmatmul.mubr.bf16.gmra.mxu0 %v599
      %v716 = vpop.f32.mrf.mxu0
      %v717 = vadd.f32 0.0, %v716
      %v718 = vpop.f32.mrf.mxu0
      %v719 = vpop.f32.mrf.mxu0
      %v720 = vadd.f32 0.0, %v719
      %v721 = vpop.f32.mrf.mxu0
      %722 = vmatprep.mubr.bf16.mxu0 0
      %723 = vmatmul.mubr.bf16.gmra.mxu0 %v602
      %v724 = vpop.f32.mrf.mxu0
      %v725 = vadd.f32 0.0, %v724
      %v726 = vpop.f32.mrf.mxu0
      %v727 = vpop.f32.mrf.mxu0
      %v728 = vadd.f32 0.0, %v727
      %v729 = vpop.f32.mrf.mxu0
      %730 = vmatprep.mubr.bf16.mxu0 0
      %731 = vmatmul.mubr.bf16.gmra.mxu0 %v605
      %v732 = vpop.f32.mrf.mxu0
      %v733 = vadd.f32 0.0, %v732
      %v734 = vpop.f32.mrf.mxu0
      %v735 = vpop.f32.mrf.mxu0
      %v736 = vadd.f32 0.0, %v735
      %v737 = vpop.f32.mrf.mxu0
      %738 = vmatprep.mubr.bf16.mxu0 0
      %739 = vmatmul.mubr.bf16.gmra.mxu0 %v608
      %v740 = vpop.f32.mrf.mxu0
      %v741 = vadd.f32 0.0, %v740
      %v742 = vpop.f32.mrf.mxu0
      %v743 = vpop.f32.mrf.mxu0
      %v744 = vpop.f32.mrf.mxu0
      %745 = vdwg.mxu0
      %v746 = vmax.f32 %v381, %v645
      %v747 = vmax.f32 %v384, %v648
      %v748 = vmax.f32 %v389, %v653
      %v749 = vmax.f32 %v392, %v656
      %v750 = vmax.f32 %v397, %v661
      %v751 = vmax.f32 %v400, %v664
      %v752 = vmax.f32 %v405, %v669
      %v753 = vmax.f32 %v408, %v672
      %v754 = vmax.f32 %v413, %v677
      %v755 = vmax.f32 %v416, %v680
      %v756 = vmax.f32 %v421, %v685
      %v757 = vmax.f32 %v424, %v688
      %v758 = vmax.f32 %v429, %v693
      %v759 = vmax.f32 %v432, %v696
      %v760 = vmax.f32 %v437, %v701
      %v761 = vmax.f32 %v440, %v704
      %v762 = vmax.f32 %v445, %v709
      %v763 = vmax.f32 %v448, %v712
      %v764 = vmax.f32 %v453, %v717
      %v765 = vmax.f32 %v456, %v720
      %v766 = vmax.f32 %v461, %v725
      %v767 = vmax.f32 %v464, %v728
      %v768 = vmax.f32 %v469, %v733
      %v769 = vmax.f32 %v472, %v736
      %v770 = vmax.f32 %v477, %v741
      %s771 = scalar_lea.vmem %s165, 200
      %v772 = vld [vmem:[%s771] sm:$0xf]
      %v773 = vld [vmem:[%s771 + $0x4] sm:$0xf]
      %v774 = vld [vmem:[%s771 + $0x8] sm:$0xf]
      %v775 = vld [vmem:[%s771 + $0xc] sm:$0xf]
      %v776 = vld [vmem:[%s771 + $0x10] sm:$0xf]
      %v777 = vld [vmem:[%s771 + $0x14] sm:$0xf]
      %v778 = vld [vmem:[%s771 + $0x18] sm:$0xf]
      %v779 = vld [vmem:[%s771 + $0x1c] sm:$0xf]
      %v780 = vld [vmem:[%s771 + $0x20] sm:$0xf]
      %v781 = vld [vmem:[%s771 + $0x24] sm:$0xf]
      %v782 = vld [vmem:[%s771 + $0x28] sm:$0xf]
      %v783 = vld [vmem:[%s771 + $0x2c] sm:$0xf]
      %v784 = vld [vmem:[%s771 + $0x30] sm:$0xf]
      %v785 = vld [vmem:[%s771 + $0x34] sm:$0xf]
      %v786 = vld [vmem:[%s771 + $0x38] sm:$0xf]
      %v787 = vld [vmem:[%s771 + $0x3c] sm:$0xf]
      %v788 = vld [vmem:[%s771 + $0x40] sm:$0xf]
      %v789 = vld [vmem:[%s771 + $0x44] sm:$0xf]
      %v790 = vld [vmem:[%s771 + $0x48] sm:$0xf]
      %v791 = vld [vmem:[%s771 + $0x4c] sm:$0xf]
      %v792 = vld [vmem:[%s771 + $0x50] sm:$0xf]
      %v793 = vld [vmem:[%s771 + $0x54] sm:$0xf]
      %v794 = vld [vmem:[%s771 + $0x58] sm:$0xf]
      %v795 = vld [vmem:[%s771 + $0x5c] sm:$0xf]
      %v796 = vld [vmem:[%s771 + $0x60] sm:$0x3]
      %v822 = vunpack.c.l.b16 %v772
      %v823 = vunpack.c.l.b16 %v773
      %v824 = vunpack.c.l.b16 %v774
      %v825 = vunpack.c.l.b16 %v775
      %v826 = vunpack.c.l.b16 %v776
      %v827 = vunpack.c.l.b16 %v777
      %v828 = vunpack.c.l.b16 %v778
      %v829 = vunpack.c.l.b16 %v779
      %v830 = vunpack.c.l.b16 %v780
      %v831 = vunpack.c.l.b16 %v781
      %v832 = vunpack.c.l.b16 %v782
      %v833 = vunpack.c.l.b16 %v783
      %v834 = vunpack.c.l.b16 %v784
      %v835 = vunpack.c.l.b16 %v785
      %v836 = vunpack.c.l.b16 %v786
      %v837 = vunpack.c.l.b16 %v787
      %v838 = vunpack.c.l.b16 %v788
      %v839 = vunpack.c.l.b16 %v789
      %v840 = vunpack.c.l.b16 %v790
      %v841 = vunpack.c.l.b16 %v791
      %v842 = vunpack.c.l.b16 %v792
      %v843 = vunpack.c.l.b16 %v793
      %v844 = vunpack.c.l.b16 %v794
      %v845 = vunpack.c.l.b16 %v795
      %v846 = vunpack.c.l.b16 %v796
      %v847 = vpack.c.b16 %v823, %v822
      %v848 = vpack.c.b16 %v825, %v824
      %v849 = vpack.c.b16 %v827, %v826
      %v850 = vpack.c.b16 %v829, %v828
      %v851 = vpack.c.b16 %v831, %v830
      %v852 = vpack.c.b16 %v833, %v832
      %v853 = vpack.c.b16 %v835, %v834
      %v854 = vpack.c.b16 %v837, %v836
      %v855 = vpack.c.b16 %v839, %v838
      %v856 = vpack.c.b16 %v841, %v840
      %v857 = vpack.c.b16 %v843, %v842
      %v858 = vpack.c.b16 %v845, %v844
      %v859 = vpack.c.b16 %v846, %v846
      %v861 = vsel %vm299, %v847, 0
      %v864 = vsel %vm299, %v848, 0
      %v867 = vsel %vm299, %v849, 0
      %v870 = vsel %vm299, %v850, 0
      %v873 = vsel %vm299, %v851, 0
      %v876 = vsel %vm299, %v852, 0
      %v879 = vsel %vm299, %v853, 0
      %v882 = vsel %vm299, %v854, 0
      %v885 = vsel %vm299, %v855, 0
      %v888 = vsel %vm299, %v856, 0
      %v891 = vsel %vm299, %v857, 0
      %v894 = vsel %vm299, %v858, 0
      %v897 = vsel %vm299, %v859, 0
      %899 = vmatprep.subr.bf16.mxu0 0
      %900 = vmatpush1.bf16.msra.mxu0 0
      %901 = vmatprep.subr.bf16.mxu0 0
      %902 = vmatpush1.bf16.msra.mxu0 0
      %903 = vmatprep.subr.bf16.mxu0 0
      %904 = vmatpush1.bf16.msra.mxu0 0
      %905 = vmatprep.subr.bf16.mxu0 0
      %906 = vmatpush1.bf16.msra.mxu0 %v344
      %907 = vmatprep.subr.bf16.mxu0 0
      %908 = vmatpush1.bf16.msra.mxu0 %v293
      %909 = vmatprep.subr.bf16.mxu0 0
      %910 = vmatpush1.bf16.msra.mxu0 %v292
      %911 = vmatprep.subr.bf16.mxu0 0
      %912 = vmatpush1.bf16.msra.mxu0 %v291
      %913 = vmatprep.subr.bf16.mxu0 0
      %914 = vmatpush1.bf16.msra.mxu0 %v290
      %915 = vmatprep.subr.bf16.mxu0 0
      %916 = vmatpush2.bf16.msra.mxu0 0
      %917 = vmatprep.subr.bf16.mxu0 0
      %918 = vmatpush2.bf16.msra.mxu0 0
      %919 = vmatprep.subr.bf16.mxu0 0
      %920 = vmatpush2.bf16.msra.mxu0 0
      %921 = vmatprep.subr.bf16.mxu0 0
      %922 = vmatpush2.bf16.msra.mxu0 0
      %923 = vmatprep.subr.bf16.mxu0 0
      %924 = vmatpush2.bf16.msra.mxu0 0
      %925 = vmatprep.subr.bf16.mxu0 0
      %926 = vmatpush2.bf16.msra.mxu0 0
      %927 = vmatprep.subr.bf16.mxu0 0
      %928 = vmatpush2.bf16.msra.mxu0 0
      %929 = vmatprep.subr.bf16.mxu0 0
      %930 = vmatpush2.bf16.msra.mxu0 0
      %931 = vmatprep.mubr.bf16.mxu0 0
      %932 = vmatmul.mubr.bf16.gmra.mxu0 %v861
      %v933 = vpop.f32.mrf.mxu0
      %v934 = vadd.f32 0.0, %v933
      %v935 = vpop.f32.mrf.mxu0
      %v936 = vpop.f32.mrf.mxu0
      %v937 = vadd.f32 0.0, %v936
      %v938 = vpop.f32.mrf.mxu0
      %939 = vmatprep.mubr.bf16.mxu0 0
      %940 = vmatmul.mubr.bf16.gmra.mxu0 %v864
      %v941 = vpop.f32.mrf.mxu0
      %v942 = vadd.f32 0.0, %v941
      %v943 = vpop.f32.mrf.mxu0
      %v944 = vpop.f32.mrf.mxu0
      %v945 = vadd.f32 0.0, %v944
      %v946 = vpop.f32.mrf.mxu0
      %947 = vmatprep.mubr.bf16.mxu0 0
      %948 = vmatmul.mubr.bf16.gmra.mxu0 %v867
      %v949 = vpop.f32.mrf.mxu0
      %v950 = vadd.f32 0.0, %v949
      %v951 = vpop.f32.mrf.mxu0
      %v952 = vpop.f32.mrf.mxu0
      %v953 = vadd.f32 0.0, %v952
      %v954 = vpop.f32.mrf.mxu0
      %955 = vmatprep.mubr.bf16.mxu0 0
      %956 = vmatmul.mubr.bf16.gmra.mxu0 %v870
      %v957 = vpop.f32.mrf.mxu0
      %v958 = vadd.f32 0.0, %v957
      %v959 = vpop.f32.mrf.mxu0
      %v960 = vpop.f32.mrf.mxu0
      %v961 = vadd.f32 0.0, %v960
      %v962 = vpop.f32.mrf.mxu0
      %963 = vmatprep.mubr.bf16.mxu0 0
      %964 = vmatmul.mubr.bf16.gmra.mxu0 %v873
      %v965 = vpop.f32.mrf.mxu0
      %v966 = vadd.f32 0.0, %v965
      %v967 = vpop.f32.mrf.mxu0
      %v968 = vpop.f32.mrf.mxu0
      %v969 = vadd.f32 0.0, %v968
      %v970 = vpop.f32.mrf.mxu0
      %971 = vmatprep.mubr.bf16.mxu0 0
      %972 = vmatmul.mubr.bf16.gmra.mxu0 %v876
      %v973 = vpop.f32.mrf.mxu0
      %v974 = vadd.f32 0.0, %v973
      %v975 = vpop.f32.mrf.mxu0
      %v976 = vpop.f32.mrf.mxu0
      %v977 = vadd.f32 0.0, %v976
      %v978 = vpop.f32.mrf.mxu0
      %979 = vmatprep.mubr.bf16.mxu0 0
      %980 = vmatmul.mubr.bf16.gmra.mxu0 %v879
      %v981 = vpop.f32.mrf.mxu0
      %v982 = vadd.f32 0.0, %v981
      %v983 = vpop.f32.mrf.mxu0
      %v984 = vpop.f32.mrf.mxu0
      %v985 = vadd.f32 0.0, %v984
      %v986 = vpop.f32.mrf.mxu0
      %987 = vmatprep.mubr.bf16.mxu0 0
      %988 = vmatmul.mubr.bf16.gmra.mxu0 %v882
      %v989 = vpop.f32.mrf.mxu0
      %v990 = vadd.f32 0.0, %v989
      %v991 = vpop.f32.mrf.mxu0
      %v992 = vpop.f32.mrf.mxu0
      %v993 = vadd.f32 0.0, %v992
      %v994 = vpop.f32.mrf.mxu0
      %995 = vmatprep.mubr.bf16.mxu0 0
      %996 = vmatmul.mubr.bf16.gmra.mxu0 %v885
      %v997 = vpop.f32.mrf.mxu0
      %v998 = vadd.f32 0.0, %v997
      %v999 = vpop.f32.mrf.mxu0
      %v1000 = vpop.f32.mrf.mxu0
      %v1001 = vadd.f32 0.0, %v1000
      %v1002 = vpop.f32.mrf.mxu0
      %1003 = vmatprep.mubr.bf16.mxu0 0
      %1004 = vmatmul.mubr.bf16.gmra.mxu0 %v888
      %v1005 = vpop.f32.mrf.mxu0
      %v1006 = vadd.f32 0.0, %v1005
      %v1007 = vpop.f32.mrf.mxu0
      %v1008 = vpop.f32.mrf.mxu0
      %v1009 = vadd.f32 0.0, %v1008
      %v1010 = vpop.f32.mrf.mxu0
      %1011 = vmatprep.mubr.bf16.mxu0 0
      %1012 = vmatmul.mubr.bf16.gmra.mxu0 %v891
      %v1013 = vpop.f32.mrf.mxu0
      %v1014 = vadd.f32 0.0, %v1013
      %v1015 = vpop.f32.mrf.mxu0
      %v1016 = vpop.f32.mrf.mxu0
      %v1017 = vadd.f32 0.0, %v1016
      %v1018 = vpop.f32.mrf.mxu0
      %1019 = vmatprep.mubr.bf16.mxu0 0
      %1020 = vmatmul.mubr.bf16.gmra.mxu0 %v894
      %v1021 = vpop.f32.mrf.mxu0
      %v1022 = vadd.f32 0.0, %v1021
      %v1023 = vpop.f32.mrf.mxu0
      %v1024 = vpop.f32.mrf.mxu0
      %v1025 = vadd.f32 0.0, %v1024
      %v1026 = vpop.f32.mrf.mxu0
      %1027 = vmatprep.mubr.bf16.mxu0 0
      %1028 = vmatmul.mubr.bf16.gmra.mxu0 %v897
      %v1029 = vpop.f32.mrf.mxu0
      %v1030 = vadd.f32 0.0, %v1029
      %v1031 = vpop.f32.mrf.mxu0
      %v1032 = vpop.f32.mrf.mxu0
      %v1033 = vpop.f32.mrf.mxu0
      %1034 = vdwg.mxu0
      %v1035 = vmax.f32 %v746, %v934
      %v1036 = vmax.f32 %v747, %v937
      %v1037 = vmax.f32 %v748, %v942
      %v1038 = vmax.f32 %v749, %v945
      %v1039 = vmax.f32 %v750, %v950
      %v1040 = vmax.f32 %v751, %v953
      %v1041 = vmax.f32 %v752, %v958
      %v1042 = vmax.f32 %v753, %v961
      %v1043 = vmax.f32 %v754, %v966
      %v1044 = vmax.f32 %v755, %v969
      %v1045 = vmax.f32 %v756, %v974
      %v1046 = vmax.f32 %v757, %v977
      %v1047 = vmax.f32 %v758, %v982
      %v1048 = vmax.f32 %v759, %v985
      %v1049 = vmax.f32 %v760, %v990
      %v1050 = vmax.f32 %v761, %v993
      %v1051 = vmax.f32 %v762, %v998
      %v1052 = vmax.f32 %v763, %v1001
      %v1053 = vmax.f32 %v764, %v1006
      %v1054 = vmax.f32 %v765, %v1009
      %v1055 = vmax.f32 %v766, %v1014
      %v1056 = vmax.f32 %v767, %v1017
      %v1057 = vmax.f32 %v768, %v1022
      %v1058 = vmax.f32 %v769, %v1025
      %v1059 = vmax.f32 %v770, %v1030
      %s1060 = scalar_lea.vmem %s165, 300
      %v1061 = vld [vmem:[%s1060] sm:$0xf]
      %v1062 = vld [vmem:[%s1060 + $0x4] sm:$0xf]
      %v1063 = vld [vmem:[%s1060 + $0x8] sm:$0xf]
      %v1064 = vld [vmem:[%s1060 + $0xc] sm:$0xf]
      %v1065 = vld [vmem:[%s1060 + $0x10] sm:$0xf]
      %v1066 = vld [vmem:[%s1060 + $0x14] sm:$0xf]
      %v1067 = vld [vmem:[%s1060 + $0x18] sm:$0xf]
      %v1068 = vld [vmem:[%s1060 + $0x1c] sm:$0xf]
      %v1069 = vld [vmem:[%s1060 + $0x20] sm:$0xf]
      %v1070 = vld [vmem:[%s1060 + $0x24] sm:$0xf]
      %v1071 = vld [vmem:[%s1060 + $0x28] sm:$0xf]
      %v1072 = vld [vmem:[%s1060 + $0x2c] sm:$0xf]
      %v1073 = vld [vmem:[%s1060 + $0x30] sm:$0xf]
      %v1074 = vld [vmem:[%s1060 + $0x34] sm:$0xf]
      %v1075 = vld [vmem:[%s1060 + $0x38] sm:$0xf]
      %v1076 = vld [vmem:[%s1060 + $0x3c] sm:$0xf]
      %v1077 = vld [vmem:[%s1060 + $0x40] sm:$0xf]
      %v1078 = vld [vmem:[%s1060 + $0x44] sm:$0xf]
      %v1079 = vld [vmem:[%s1060 + $0x48] sm:$0xf]
      %v1080 = vld [vmem:[%s1060 + $0x4c] sm:$0xf]
      %v1081 = vld [vmem:[%s1060 + $0x50] sm:$0xf]
      %v1082 = vld [vmem:[%s1060 + $0x54] sm:$0xf]
      %v1083 = vld [vmem:[%s1060 + $0x58] sm:$0xf]
      %v1084 = vld [vmem:[%s1060 + $0x5c] sm:$0xf]
      %v1085 = vld [vmem:[%s1060 + $0x60] sm:$0x3]
      %v1111 = vunpack.c.l.b16 %v1061
      %v1112 = vunpack.c.l.b16 %v1062
      %v1113 = vunpack.c.l.b16 %v1063
      %v1114 = vunpack.c.l.b16 %v1064
      %v1115 = vunpack.c.l.b16 %v1065
      %v1116 = vunpack.c.l.b16 %v1066
      %v1117 = vunpack.c.l.b16 %v1067
      %v1118 = vunpack.c.l.b16 %v1068
      %v1119 = vunpack.c.l.b16 %v1069
      %v1120 = vunpack.c.l.b16 %v1070
      %v1121 = vunpack.c.l.b16 %v1071
      %v1122 = vunpack.c.l.b16 %v1072
      %v1123 = vunpack.c.l.b16 %v1073
      %v1124 = vunpack.c.l.b16 %v1074
      %v1125 = vunpack.c.l.b16 %v1075
      %v1126 = vunpack.c.l.b16 %v1076
      %v1127 = vunpack.c.l.b16 %v1077
      %v1128 = vunpack.c.l.b16 %v1078
      %v1129 = vunpack.c.l.b16 %v1079
      %v1130 = vunpack.c.l.b16 %v1080
      %v1131 = vunpack.c.l.b16 %v1081
      %v1132 = vunpack.c.l.b16 %v1082
      %v1133 = vunpack.c.l.b16 %v1083
      %v1134 = vunpack.c.l.b16 %v1084
      %v1135 = vunpack.c.l.b16 %v1085
      %v1136 = vpack.c.b16 %v1112, %v1111
      %v1137 = vpack.c.b16 %v1114, %v1113
      %v1138 = vpack.c.b16 %v1116, %v1115
      %v1139 = vpack.c.b16 %v1118, %v1117
      %v1140 = vpack.c.b16 %v1120, %v1119
      %v1141 = vpack.c.b16 %v1122, %v1121
      %v1142 = vpack.c.b16 %v1124, %v1123
      %v1143 = vpack.c.b16 %v1126, %v1125
      %v1144 = vpack.c.b16 %v1128, %v1127
      %v1145 = vpack.c.b16 %v1130, %v1129
      %v1146 = vpack.c.b16 %v1132, %v1131
      %v1147 = vpack.c.b16 %v1134, %v1133
      %v1148 = vpack.c.b16 %v1135, %v1135
      %v1150 = vsel %vm299, %v1136, 0
      %v1153 = vsel %vm299, %v1137, 0
      %v1156 = vsel %vm299, %v1138, 0
      %v1159 = vsel %vm299, %v1139, 0
      %v1162 = vsel %vm299, %v1140, 0
      %v1165 = vsel %vm299, %v1141, 0
      %v1168 = vsel %vm299, %v1142, 0
      %v1171 = vsel %vm299, %v1143, 0
      %v1174 = vsel %vm299, %v1144, 0
      %v1177 = vsel %vm299, %v1145, 0
      %v1180 = vsel %vm299, %v1146, 0
      %v1183 = vsel %vm299, %v1147, 0
      %v1186 = vsel %vm299, %v1148, 0
      %1188 = vmatprep.subr.bf16.mxu0 0
      %1189 = vmatpush1.bf16.msra.mxu0 0
      %1190 = vmatprep.subr.bf16.mxu0 0
      %1191 = vmatpush1.bf16.msra.mxu0 0
      %1192 = vmatprep.subr.bf16.mxu0 0
      %1193 = vmatpush1.bf16.msra.mxu0 0
      %1194 = vmatprep.subr.bf16.mxu0 0
      %1195 = vmatpush1.bf16.msra.mxu0 %v344
      %1196 = vmatprep.subr.bf16.mxu0 0
      %1197 = vmatpush1.bf16.msra.mxu0 %v293
      %1198 = vmatprep.subr.bf16.mxu0 0
      %1199 = vmatpush1.bf16.msra.mxu0 %v292
      %1200 = vmatprep.subr.bf16.mxu0 0
      %1201 = vmatpush1.bf16.msra.mxu0 %v291
      %1202 = vmatprep.subr.bf16.mxu0 0
      %1203 = vmatpush1.bf16.msra.mxu0 %v290
      %1204 = vmatprep.subr.bf16.mxu0 0
      %1205 = vmatpush2.bf16.msra.mxu0 0
      %1206 = vmatprep.subr.bf16.mxu0 0
      %1207 = vmatpush2.bf16.msra.mxu0 0
      %1208 = vmatprep.subr.bf16.mxu0 0
      %1209 = vmatpush2.bf16.msra.mxu0 0
      %1210 = vmatprep.subr.bf16.mxu0 0
      %1211 = vmatpush2.bf16.msra.mxu0 0
      %1212 = vmatprep.subr.bf16.mxu0 0
      %1213 = vmatpush2.bf16.msra.mxu0 0
      %1214 = vmatprep.subr.bf16.mxu0 0
      %1215 = vmatpush2.bf16.msra.mxu0 0
      %1216 = vmatprep.subr.bf16.mxu0 0
      %1217 = vmatpush2.bf16.msra.mxu0 0
      %1218 = vmatprep.subr.bf16.mxu0 0
      %1219 = vmatpush2.bf16.msra.mxu0 0
      %1220 = vmatprep.mubr.bf16.mxu0 0
      %1221 = vmatmul.mubr.bf16.gmra.mxu0 %v1150
      %v1222 = vpop.f32.mrf.mxu0
      %v1223 = vadd.f32 0.0, %v1222
      %v1224 = vpop.f32.mrf.mxu0
      %v1225 = vpop.f32.mrf.mxu0
      %v1226 = vadd.f32 0.0, %v1225
      %v1227 = vpop.f32.mrf.mxu0
      %1228 = vmatprep.mubr.bf16.mxu0 0
      %1229 = vmatmul.mubr.bf16.gmra.mxu0 %v1153
      %v1230 = vpop.f32.mrf.mxu0
      %v1231 = vadd.f32 0.0, %v1230
      %v1232 = vpop.f32.mrf.mxu0
      %v1233 = vpop.f32.mrf.mxu0
      %v1234 = vadd.f32 0.0, %v1233
      %v1235 = vpop.f32.mrf.mxu0
      %1236 = vmatprep.mubr.bf16.mxu0 0
      %1237 = vmatmul.mubr.bf16.gmra.mxu0 %v1156
      %v1238 = vpop.f32.mrf.mxu0
      %v1239 = vadd.f32 0.0, %v1238
      %v1240 = vpop.f32.mrf.mxu0
      %v1241 = vpop.f32.mrf.mxu0
      %v1242 = vadd.f32 0.0, %v1241
      %v1243 = vpop.f32.mrf.mxu0
      %1244 = vmatprep.mubr.bf16.mxu0 0
      %1245 = vmatmul.mubr.bf16.gmra.mxu0 %v1159
      %v1246 = vpop.f32.mrf.mxu0
      %v1247 = vadd.f32 0.0, %v1246
      %v1248 = vpop.f32.mrf.mxu0
      %v1249 = vpop.f32.mrf.mxu0
      %v1250 = vadd.f32 0.0, %v1249
      %v1251 = vpop.f32.mrf.mxu0
      %1252 = vmatprep.mubr.bf16.mxu0 0
      %1253 = vmatmul.mubr.bf16.gmra.mxu0 %v1162
      %v1254 = vpop.f32.mrf.mxu0
      %v1255 = vadd.f32 0.0, %v1254
      %v1256 = vpop.f32.mrf.mxu0
      %v1257 = vpop.f32.mrf.mxu0
      %v1258 = vadd.f32 0.0, %v1257
      %v1259 = vpop.f32.mrf.mxu0
      %1260 = vmatprep.mubr.bf16.mxu0 0
      %1261 = vmatmul.mubr.bf16.gmra.mxu0 %v1165
      %v1262 = vpop.f32.mrf.mxu0
      %v1263 = vadd.f32 0.0, %v1262
      %v1264 = vpop.f32.mrf.mxu0
      %v1265 = vpop.f32.mrf.mxu0
      %v1266 = vadd.f32 0.0, %v1265
      %v1267 = vpop.f32.mrf.mxu0
      %1268 = vmatprep.mubr.bf16.mxu0 0
      %1269 = vmatmul.mubr.bf16.gmra.mxu0 %v1168
      %v1270 = vpop.f32.mrf.mxu0
      %v1271 = vadd.f32 0.0, %v1270
      %v1272 = vpop.f32.mrf.mxu0
      %v1273 = vpop.f32.mrf.mxu0
      %v1274 = vadd.f32 0.0, %v1273
      %v1275 = vpop.f32.mrf.mxu0
      %1276 = vmatprep.mubr.bf16.mxu0 0
      %1277 = vmatmul.mubr.bf16.gmra.mxu0 %v1171
      %v1278 = vpop.f32.mrf.mxu0
      %v1279 = vadd.f32 0.0, %v1278
      %v1280 = vpop.f32.mrf.mxu0
      %v1281 = vpop.f32.mrf.mxu0
      %v1282 = vadd.f32 0.0, %v1281
      %v1283 = vpop.f32.mrf.mxu0
      %1284 = vmatprep.mubr.bf16.mxu0 0
      %1285 = vmatmul.mubr.bf16.gmra.mxu0 %v1174
      %v1286 = vpop.f32.mrf.mxu0
      %v1287 = vadd.f32 0.0, %v1286
      %v1288 = vpop.f32.mrf.mxu0
      %v1289 = vpop.f32.mrf.mxu0
      %v1290 = vadd.f32 0.0, %v1289
      %v1291 = vpop.f32.mrf.mxu0
      %1292 = vmatprep.mubr.bf16.mxu0 0
      %1293 = vmatmul.mubr.bf16.gmra.mxu0 %v1177
      %v1294 = vpop.f32.mrf.mxu0
      %v1295 = vadd.f32 0.0, %v1294
      %v1296 = vpop.f32.mrf.mxu0
      %v1297 = vpop.f32.mrf.mxu0
      %v1298 = vadd.f32 0.0, %v1297
      %v1299 = vpop.f32.mrf.mxu0
      %1300 = vmatprep.mubr.bf16.mxu0 0
      %1301 = vmatmul.mubr.bf16.gmra.mxu0 %v1180
      %v1302 = vpop.f32.mrf.mxu0
      %v1303 = vadd.f32 0.0, %v1302
      %v1304 = vpop.f32.mrf.mxu0
      %v1305 = vpop.f32.mrf.mxu0
      %v1306 = vadd.f32 0.0, %v1305
      %v1307 = vpop.f32.mrf.mxu0
      %1308 = vmatprep.mubr.bf16.mxu0 0
      %1309 = vmatmul.mubr.bf16.gmra.mxu0 %v1183
      %v1310 = vpop.f32.mrf.mxu0
      %v1311 = vadd.f32 0.0, %v1310
      %v1312 = vpop.f32.mrf.mxu0
      %v1313 = vpop.f32.mrf.mxu0
      %v1314 = vadd.f32 0.0, %v1313
      %v1315 = vpop.f32.mrf.mxu0
      %1316 = vmatprep.mubr.bf16.mxu0 0
      %1317 = vmatmul.mubr.bf16.gmra.mxu0 %v1186
      %v1318 = vpop.f32.mrf.mxu0
      %v1319 = vadd.f32 0.0, %v1318
      %v1320 = vpop.f32.mrf.mxu0
      %v1321 = vpop.f32.mrf.mxu0
      %v1322 = vpop.f32.mrf.mxu0
      %1323 = vdwg.mxu0
      %v1324 = vmax.f32 %v1035, %v1223
      %v1325 = vmax.f32 %v1036, %v1226
      %v1326 = vmax.f32 %v1037, %v1231
      %v1327 = vmax.f32 %v1038, %v1234
      %v1328 = vmax.f32 %v1039, %v1239
      %v1329 = vmax.f32 %v1040, %v1242
      %v1330 = vmax.f32 %v1041, %v1247
      %v1331 = vmax.f32 %v1042, %v1250
      %v1332 = vmax.f32 %v1043, %v1255
      %v1333 = vmax.f32 %v1044, %v1258
      %v1334 = vmax.f32 %v1045, %v1263
      %v1335 = vmax.f32 %v1046, %v1266
      %v1336 = vmax.f32 %v1047, %v1271
      %v1337 = vmax.f32 %v1048, %v1274
      %v1338 = vmax.f32 %v1049, %v1279
      %v1339 = vmax.f32 %v1050, %v1282
      %v1340 = vmax.f32 %v1051, %v1287
      %v1341 = vmax.f32 %v1052, %v1290
      %v1342 = vmax.f32 %v1053, %v1295
      %v1343 = vmax.f32 %v1054, %v1298
      %v1344 = vmax.f32 %v1055, %v1303
      %v1345 = vmax.f32 %v1056, %v1306
      %v1346 = vmax.f32 %v1057, %v1311
      %v1347 = vmax.f32 %v1058, %v1314
      %v1348 = vmax.f32 %v1059, %v1319
      %v1349 = vld [vmem:[%s2] sm:$0x1]
      %v1351 = vlaneseq
      %v1352 = vshrl.u32 %v1351, 7
      %v1353 = vsub.s32 0, %v1352
      %v1354 = vrot.slane %v1349, %v1353
      %v1356 = vadd.f32 %v1324, %v1354
      %v1357 = vadd.f32 %v1325, %v1354
      %v1358 = vadd.f32 %v1326, %v1354
      %v1359 = vadd.f32 %v1327, %v1354
      %v1360 = vadd.f32 %v1328, %v1354
      %v1361 = vadd.f32 %v1329, %v1354
      %v1362 = vadd.f32 %v1330, %v1354
      %v1363 = vadd.f32 %v1331, %v1354
      %v1364 = vadd.f32 %v1332, %v1354
      %v1365 = vadd.f32 %v1333, %v1354
      %v1366 = vadd.f32 %v1334, %v1354
      %v1367 = vadd.f32 %v1335, %v1354
      %v1368 = vadd.f32 %v1336, %v1354
      %v1369 = vadd.f32 %v1337, %v1354
      %v1370 = vadd.f32 %v1338, %v1354
      %v1371 = vadd.f32 %v1339, %v1354
      %v1372 = vadd.f32 %v1340, %v1354
      %v1373 = vadd.f32 %v1341, %v1354
      %v1374 = vadd.f32 %v1342, %v1354
      %v1375 = vadd.f32 %v1343, %v1354
      %v1376 = vadd.f32 %v1344, %v1354
      %v1377 = vadd.f32 %v1345, %v1354
      %v1378 = vadd.f32 %v1346, %v1354
      %v1379 = vadd.f32 %v1347, %v1354
      %v1380 = vadd.f32 %v1348, %v1354
      %v1381 = vmax.f32 %v1356, 0.0
      %v1382 = vmax.f32 %v1357, 0.0
      %v1383 = vmax.f32 %v1358, 0.0
      %v1384 = vmax.f32 %v1359, 0.0
      %v1385 = vmax.f32 %v1360, 0.0
      %v1386 = vmax.f32 %v1361, 0.0
      %v1387 = vmax.f32 %v1362, 0.0
      %v1388 = vmax.f32 %v1363, 0.0
      %v1389 = vmax.f32 %v1364, 0.0
      %v1390 = vmax.f32 %v1365, 0.0
      %v1391 = vmax.f32 %v1366, 0.0
      %v1392 = vmax.f32 %v1367, 0.0
      %v1393 = vmax.f32 %v1368, 0.0
      %v1394 = vmax.f32 %v1369, 0.0
      %v1395 = vmax.f32 %v1370, 0.0
      %v1396 = vmax.f32 %v1371, 0.0
      %v1397 = vmax.f32 %v1372, 0.0
      %v1398 = vmax.f32 %v1373, 0.0
      %v1399 = vmax.f32 %v1374, 0.0
      %v1400 = vmax.f32 %v1375, 0.0
      %v1401 = vmax.f32 %v1376, 0.0
      %v1402 = vmax.f32 %v1377, 0.0
      %v1403 = vmax.f32 %v1378, 0.0
      %v1404 = vmax.f32 %v1379, 0.0
      %v1405 = vmax.f32 %v1380, 0.0
      %v1406 = vpack.c.bf16 %v1382, %v1381
      %v1407 = vpack.c.bf16 %v1384, %v1383
      %v1408 = vpack.c.bf16 %v1386, %v1385
      %v1409 = vpack.c.bf16 %v1388, %v1387
      %v1410 = vpack.c.bf16 %v1390, %v1389
      %v1411 = vpack.c.bf16 %v1392, %v1391
      %v1412 = vpack.c.bf16 %v1394, %v1393
      %v1413 = vpack.c.bf16 %v1396, %v1395
      %v1414 = vpack.c.bf16 %v1398, %v1397
      %v1415 = vpack.c.bf16 %v1400, %v1399
      %v1416 = vpack.c.bf16 %v1402, %v1401
      %v1417 = vpack.c.bf16 %v1404, %v1403
      %v1418 = vpack.c.bf16 %v1405, %v1405
      %v1432 = vunpack.c.l.b16 %v1406
      %v1433 = vunpack.c.h.b16 %v1406
      %v1434 = vunpack.c.l.b16 %v1407
      %v1435 = vunpack.c.h.b16 %v1407
      %v1436 = vunpack.c.l.b16 %v1408
      %v1437 = vunpack.c.h.b16 %v1408
      %v1438 = vunpack.c.l.b16 %v1409
      %v1439 = vunpack.c.h.b16 %v1409
      %v1440 = vunpack.c.l.b16 %v1410
      %v1441 = vunpack.c.h.b16 %v1410
      %v1442 = vunpack.c.l.b16 %v1411
      %v1443 = vunpack.c.h.b16 %v1411
      %v1444 = vunpack.c.l.b16 %v1412
      %v1445 = vunpack.c.h.b16 %v1412
      %v1446 = vunpack.c.l.b16 %v1413
      %v1447 = vunpack.c.h.b16 %v1413
      %v1448 = vunpack.c.l.b16 %v1414
      %v1449 = vunpack.c.h.b16 %v1414
      %v1450 = vunpack.c.l.b16 %v1415
      %v1451 = vunpack.c.h.b16 %v1415
      %v1452 = vunpack.c.l.b16 %v1416
      %v1453 = vunpack.c.h.b16 %v1416
      %v1454 = vunpack.c.l.b16 %v1417
      %v1455 = vunpack.c.h.b16 %v1417
      %v1456 = vunpack.c.l.b16 %v1418
      %v1457 = vpack.c.b16 %v1432, %v1432
      %v1458 = vpack.c.b16 %v1433, %v1433
      %v1459 = vpack.c.b16 %v1434, %v1434
      %v1460 = vpack.c.b16 %v1435, %v1435
      %v1461 = vpack.c.b16 %v1436, %v1436
      %v1462 = vpack.c.b16 %v1437, %v1437
      %v1463 = vpack.c.b16 %v1438, %v1438
      %v1464 = vpack.c.b16 %v1439, %v1439
      %v1465 = vpack.c.b16 %v1440, %v1440
      %v1466 = vpack.c.b16 %v1441, %v1441
      %v1467 = vpack.c.b16 %v1442, %v1442
      %v1468 = vpack.c.b16 %v1443, %v1443
      %v1469 = vpack.c.b16 %v1444, %v1444
      %v1470 = vpack.c.b16 %v1445, %v1445
      %v1471 = vpack.c.b16 %v1446, %v1446
      %v1472 = vpack.c.b16 %v1447, %v1447
      %v1473 = vpack.c.b16 %v1448, %v1448
      %v1474 = vpack.c.b16 %v1449, %v1449
      %v1475 = vpack.c.b16 %v1450, %v1450
      %v1476 = vpack.c.b16 %v1451, %v1451
      %v1477 = vpack.c.b16 %v1452, %v1452
      %v1478 = vpack.c.b16 %v1453, %v1453
      %v1479 = vpack.c.b16 %v1454, %v1454
      %v1480 = vpack.c.b16 %v1455, %v1455
      %v1481 = vpack.c.b16 %v1456, %v1456
      %vm1507 = vcmask 60416
      %1508 = vst.msk [vmem:[%s170] sm:$0xf] %vm1507, %v1457
      %1509 = vst.msk [vmem:[%s170 + $0x4] sm:$0xf] %vm1507, %v1458
      %1510 = vst.msk [vmem:[%s170 + $0x8] sm:$0xf] %vm1507, %v1459
      %1511 = vst.msk [vmem:[%s170 + $0xc] sm:$0xf] %vm1507, %v1460
      %1512 = vst.msk [vmem:[%s170 + $0x10] sm:$0xf] %vm1507, %v1461
      %1513 = vst.msk [vmem:[%s170 + $0x14] sm:$0xf] %vm1507, %v1462
      %1514 = vst.msk [vmem:[%s170 + $0x18] sm:$0xf] %vm1507, %v1463
      %1515 = vst.msk [vmem:[%s170 + $0x1c] sm:$0xf] %vm1507, %v1464
      %1516 = vst.msk [vmem:[%s170 + $0x20] sm:$0xf] %vm1507, %v1465
      %1517 = vst.msk [vmem:[%s170 + $0x24] sm:$0xf] %vm1507, %v1466
      %1518 = vst.msk [vmem:[%s170 + $0x28] sm:$0xf] %vm1507, %v1467
      %1519 = vst.msk [vmem:[%s170 + $0x2c] sm:$0xf] %vm1507, %v1468
      %1520 = vst.msk [vmem:[%s170 + $0x30] sm:$0xf] %vm1507, %v1469
      %1521 = vst.msk [vmem:[%s170 + $0x34] sm:$0xf] %vm1507, %v1470
      %1522 = vst.msk [vmem:[%s170 + $0x38] sm:$0xf] %vm1507, %v1471
      %1523 = vst.msk [vmem:[%s170 + $0x3c] sm:$0xf] %vm1507, %v1472
      %1524 = vst.msk [vmem:[%s170 + $0x40] sm:$0xf] %vm1507, %v1473
      %1525 = vst.msk [vmem:[%s170 + $0x44] sm:$0xf] %vm1507, %v1474
      %1526 = vst.msk [vmem:[%s170 + $0x48] sm:$0xf] %vm1507, %v1475
      %1527 = vst.msk [vmem:[%s170 + $0x4c] sm:$0xf] %vm1507, %v1476
      %1528 = vst.msk [vmem:[%s170 + $0x50] sm:$0xf] %vm1507, %v1477
      %1529 = vst.msk [vmem:[%s170 + $0x54] sm:$0xf] %vm1507, %v1478
      %1530 = vst.msk [vmem:[%s170 + $0x58] sm:$0xf] %vm1507, %v1479
      %1531 = vst.msk [vmem:[%s170 + $0x5c] sm:$0xf] %vm1507, %v1480
      %vm1532 = vcmask 58368
      %1533 = vst.msk [vmem:[%s170 + $0x60] sm:$0x3] %vm1532, %v1481
      %p1534 = scmp.lt.s32.totalorder %s14, 1
      %s1535 = scalar_select %p1534, %s14, 1
      %s1536 = smul.addr %s1535, 25
      %s1537 = smul.addr %s1536, 4
      %s1538 = scalar_lea.vmem %s3, %s1537
      // Predicated region
      $region33: #{net_forward.3} parent=31 // pred_check
        %p1539 = pneg %p100
      $region34: #{net_forward.3} parent=31 // pred_check_branch
        %1541 = sbr.rel (%p1539) target = $region36
      $region35: #{net_forward.3} parent=31 // pred_region
        _
      $region36: #{net_forward.3} parent=31 // pred_fallthru
        _
    $region32: #{net_forward.3} parent=5 // pred_fallthru
      _
    %p1542 = scmp.le.s32.totalorder 2, %s9
    // Predicated region
    $region37: #{net_forward.3} parent=5 // pred_check
      %p1543 = pneg %p1542
    $region38: #{net_forward.3} parent=5 // pred_check_branch
      %1545 = sbr.rel (%p1543) target = $region40
    $region39: #{net_forward.3} parent=5 // pred_region
      %s1546 = ssub.s32 %s9, 2
      // Predicated region
      $region41: #{net_forward.3} parent=39 // pred_check
        %p1547 = pneg %p106
      $region42: #{net_forward.3} parent=39 // pred_check_branch
        %1549 = sbr.rel (%p1547) target = $region44
      $region43: #{net_forward.3} parent=39 // pred_region
        %p1550 = scmp.lt.s32.totalorder %s15, 1
        %s1551 = scalar_select %p1550, %s15, 1
        %s1552 = smul.addr %s1551, 25
        %s1553 = smul.addr %s1552, 4
        %s1554 = scalar_lea.vmem %s3, %s1553
      $region44: #{net_forward.3} parent=39 // pred_fallthru
        _
    $region40: #{net_forward.3} parent=5 // pred_fallthru
      _
  $region6: #{net_forward.3} parent=0 // loop_footer
    %s13 = sadd.s32 1, %s9
  $region7: #{net_forward.3} parent=0 // loop_footer_branch
    %8 = sbr.rel target = $region3
  $region8: #{net_forward.3} parent=0 // loop_exit
    _

// kernel: net_forward.4
$region0: #{net_forward.4}
  #allocation0 [shape = 'u32[]', space=smem, size = 0x4, offset = 0x4, fixed_abs, tag = 'smem constant byte address 0x4 - core index']
  #allocation1 [shape = 'u32[144,128]{1,0:T(1,128)}', space=vmem, size = 0x12000, scoped, tag = 'internal scratch']
  %s0 = inlined_call_operand.vmem [shape: bf16[2,4,25,200], index: 0, kind: input, shape index: {}]
  %s1 = inlined_call_operand.vmem [shape: bf16[200,16], index: 1, kind: input, shape index: {}]
  %s2 = inlined_call_operand.vmem [shape: f32[1,16], index: 2, kind: input, shape index: {}]
  %s3 = inlined_call_operand.vmem [shape: bf16[2,25,16], index: 3, kind: output, shape index: {}]
  %s4 = sld [smem:[#allocation0]]
  $region45: #{net_forward.4} parent=0
    _
  %s6 = ssub.s32 1, %s4
  %s7 = scalar_select 0, %s6, %s4
  loop: start=0, step=1, limit=4
  $region2: #{net_forward.4} parent=0 // loop_pre_header
    _
  $region3: #{net_forward.4} parent=0 // loop_header
    %s9 = sphi 0, %s13
    %p10 = scmp.ge.s32.totalorder %s9, 4
    %s19 = sphi 0, %s21
    %s22 = sphi 0, %s19
    %s23 = sphi 0, %s22
    %s39 = sphi 0, %s23
    %s43 = sphi 0, %s43
    %s45 = sphi 0, %s43
    %s46 = sphi 0, %s45
    %s60 = sphi 0, %s46
    %s64 = sphi 0, %s64
    %s66 = sphi 0, %s64
    %s67 = sphi 0, %s66
    %s81 = sphi 0, %s67
    %s87 = sphi 0, %s89
    %s90 = sphi 0, %s87
    %s91 = sphi 0, %s90
    %s107 = sphi 0, %s91
  $region4: #{net_forward.4} parent=0 // loop_header_branch
    %12 = sbr.rel (%p10) target = $region8
  $region5: #{net_forward.4} parent=0 // loop_body
    %s14 = ssub.s32 %s9, 1
    %s15 = ssub.s32 %s9, 2
    %s16 = sadd.s32 %s9, 1
    %s17 = ssub.s32 %s9, %s16
    %p18 = scmp.eq.s32.totalorder %s17, 0
    %s20 = sadd.s32 %s19, 1
    %s21 = scalar_select %p18, %s19, %s20
    %p24 = pneg %p18
    %p25 = scmp.eq.s32.totalorder %s9, 1
    %p26 = por %p24, %p25
    %p27 = scmp.ne.s32.totalorder %s19, %s22
    %p28 = scmp.eq.s32.totalorder %s9, 0
    %p29 = por %p27, %p28
    %p30 = scmp.ne.s32.totalorder %s19, %s22
    %p31 = scmp.eq.s32.totalorder %s14, 1
    %p32 = por %p30, %p31
    %p33 = scmp.ne.s32.totalorder %s22, %s23
    %p34 = scmp.eq.s32.totalorder %s14, 0
    %p35 = por %p33, %p34
    %p36 = scmp.ne.s32.totalorder %s22, %s23
    %p37 = scmp.eq.s32.totalorder %s15, 1
    %p38 = por %p36, %p37
    %p40 = scmp.ne.s32.totalorder %s23, %s39
    %p41 = scmp.eq.s32.totalorder %s15, 0
    %p42 = por %p40, %p41
    %s44 = sadd.s32 %s43, 1
    %p47 = scmp.eq.s32.totalorder %s9, 1
    %p48 = scmp.ne.s32.totalorder %s43, %s45
    %p49 = scmp.eq.s32.totalorder %s9, 0
    %p50 = por %p48, %p49
    %p51 = scmp.ne.s32.totalorder %s43, %s45
    %p52 = scmp.eq.s32.totalorder %s14, 1
    %p53 = por %p51, %p52
    %p54 = scmp.ne.s32.totalorder %s45, %s46
    %p55 = scmp.eq.s32.totalorder %s14, 0
    %p56 = por %p54, %p55
    %p57 = scmp.ne.s32.totalorder %s45, %s46
    %p58 = scmp.eq.s32.totalorder %s15, 1
    %p59 = por %p57, %p58
    %p61 = scmp.ne.s32.totalorder %s46, %s60
    %p62 = scmp.eq.s32.totalorder %s15, 0
    %p63 = por %p61, %p62
    %s65 = sadd.s32 %s64, 1
    %p68 = scmp.eq.s32.totalorder %s9, 1
    %p69 = scmp.ne.s32.totalorder %s64, %s66
    %p70 = scmp.eq.s32.totalorder %s9, 0
    %p71 = por %p69, %p70
    %p72 = scmp.ne.s32.totalorder %s64, %s66
    %p73 = scmp.eq.s32.totalorder %s14, 1
    %p74 = por %p72, %p73
    %p75 = scmp.ne.s32.totalorder %s66, %s67
    %p76 = scmp.eq.s32.totalorder %s14, 0
    %p77 = por %p75, %p76
    %p78 = scmp.ne.s32.totalorder %s66, %s67
    %p79 = scmp.eq.s32.totalorder %s15, 1
    %p80 = por %p78, %p79
    %p82 = scmp.ne.s32.totalorder %s67, %s81
    %p83 = scmp.eq.s32.totalorder %s15, 0
    %p84 = por %p82, %p83
    %s85 = ssub.s32 %s9, %s16
    %p86 = scmp.eq.s32.totalorder %s85, 0
    %s88 = sadd.s32 %s87, 1
    %s89 = scalar_select %p86, %s87, %s88
    %p92 = pneg %p86
    %p93 = scmp.eq.s32.totalorder %s9, 1
    %p94 = por %p92, %p93
    %p95 = scmp.ne.s32.totalorder %s87, %s90
    %p96 = scmp.eq.s32.totalorder %s9, 0
    %p97 = por %p95, %p96
    %p98 = scmp.ne.s32.totalorder %s87, %s90
    %p99 = scmp.eq.s32.totalorder %s14, 1
    %p100 = por %p98, %p99
    %p101 = scmp.ne.s32.totalorder %s90, %s91
    %p102 = scmp.eq.s32.totalorder %s14, 0
    %p103 = por %p101, %p102
    %p104 = scmp.ne.s32.totalorder %s90, %s91
    %p105 = scmp.eq.s32.totalorder %s15, 1
    %p106 = por %p104, %p105
    %p108 = scmp.ne.s32.totalorder %s91, %s107
    %p109 = scmp.eq.s32.totalorder %s15, 0
    %p110 = por %p108, %p109
    %p111 = scmp.le.s32.totalorder 1, %s9
    %p112 = scmp.lt.s32.totalorder %s9, 3
    %p113 = pnand %p111, %p112
    %p114 = pneg %p113
    // Predicated region
    $region9: #{net_forward.4} parent=5 // pred_check
      _
    $region10: #{net_forward.4} parent=5 // pred_check_branch
      %116 = sbr.rel (%p113) target = $region12
    $region11: #{net_forward.4} parent=5 // pred_region
      %s117 = ssub.s32 %s9, 1
      // Predicated region
      $region13: #{net_forward.4} parent=11 // pred_check
        %p118 = pneg %p56
      $region14: #{net_forward.4} parent=11 // pred_check_branch
        %120 = sbr.rel (%p118) target = $region16
      $region15: #{net_forward.4} parent=11 // pred_region
        _
      $region16: #{net_forward.4} parent=11 // pred_fallthru
        _
      // Predicated region
      $region17: #{net_forward.4} parent=11 // pred_check
        %p121 = pneg %p77
      $region18: #{net_forward.4} parent=11 // pred_check_branch
        %123 = sbr.rel (%p121) target = $region20
      $region19: #{net_forward.4} parent=11 // pred_region
        _
      $region20: #{net_forward.4} parent=11 // pred_fallthru
        _
    $region12: #{net_forward.4} parent=5 // pred_fallthru
      _
    %p124 = scmp.lt.s32.totalorder %s9, 2
    // Predicated region
    $region21: #{net_forward.4} parent=5 // pred_check
      %p125 = pneg %p124
    $region22: #{net_forward.4} parent=5 // pred_check_branch
      %127 = sbr.rel (%p125) target = $region24
    $region23: #{net_forward.4} parent=5 // pred_region
      // Predicated region
      $region25: #{net_forward.4} parent=23 // pred_check
        %p128 = pneg %p29
      $region26: #{net_forward.4} parent=23 // pred_check_branch
        %130 = sbr.rel (%p128) target = $region28
      $region27: #{net_forward.4} parent=23 // pred_region
        %p131 = scmp.lt.s32.totalorder %s9, 1
        %s132 = scalar_select %p131, %s9, 1
        %s133 = smul.addr %s132, 32
        %s134 = smul.addr %s133, 4
        %s135 = scalar_lea.vmem %s0, %s134
      $region28: #{net_forward.4} parent=23 // pred_fallthru
        _
    $region24: #{net_forward.4} parent=5 // pred_fallthru
      _
    %p136 = scmp.le.s32.totalorder 1, %s9
    %p137 = scmp.lt.s32.totalorder %s9, 3
    %p138 = pnand %p136, %p137
    %p139 = pneg %p138
    // Predicated region
    $region29: #{net_forward.4} parent=5 // pred_check
      _
    $region30: #{net_forward.4} parent=5 // pred_check_branch
      %141 = sbr.rel (%p138) target = $region32
    $region31: #{net_forward.4} parent=5 // pred_region
      %s142 = ssub.s32 %s9, 1
      %p143 = scmp.lt.s32.totalorder %s14, 1
      %s144 = scalar_select %p143, %s14, 1
      %s145 = smul.addr %s144, 32
      %s146 = smul.addr %s145, 4
      %s147 = scalar_lea.vmem %s0, %s146
      %p148 = pneg %p35
      %p149 = pneg %p32
      %p150 = pneg %p56
      %p151 = pneg %p53
      %p152 = pneg %p77
      %p153 = pneg %p74
      %p154 = pneg %p103
      %p155 = pneg %p100
      %p156 = scmp.lt.s32.totalorder %s14, 1
      %s157 = scalar_select %p156, %s14, 1
      %s158 = smul.addr %s157, 4
      %s159 = smul.addr %s158, 4
      %s160 = scalar_lea.vmem %s3, %s159
      %p161 = scmp.lt.s32.totalorder %s14, 1
      %s162 = scalar_select %p161, %s14, 1
      %s163 = smul.addr %s162, 32
      %s164 = smul.addr %s163, 4
      %s165 = scalar_lea.vmem %s0, %s164
      %p166 = scmp.lt.s32.totalorder %s14, 1
      %s167 = scalar_select %p166, %s14, 1
      %s168 = smul.addr %s167, 4
      %s169 = smul.addr %s168, 4
      %s170 = scalar_lea.vmem %s3, %s169
      %v172 = vld [vmem:[%s1] sm:$0xf]
      %v173 = vld [vmem:[%s1 + $0x4] sm:$0xf]
      %v174 = vld [vmem:[%s1 + $0x8] sm:$0xf]
      %v175 = vld [vmem:[%s1 + $0xc] sm:$0xf]
      %v176 = vld [vmem:[%s1 + $0x10] sm:$0xf]
      %v177 = vld [vmem:[%s1 + $0x14] sm:$0xf]
      %v178 = vld [vmem:[%s1 + $0x18] sm:$0xf]
      %v179 = vld [vmem:[%s1 + $0x1c] sm:$0xf]
      %v180 = vld [vmem:[%s1 + $0x20] sm:$0xf]
      %v181 = vld [vmem:[%s1 + $0x24] sm:$0xf]
      %v182 = vld [vmem:[%s1 + $0x28] sm:$0xf]
      %v183 = vld [vmem:[%s1 + $0x2c] sm:$0xf]
      %v184 = vld [vmem:[%s1 + $0x30] sm:$0xf]
      %v185 = vld [vmem:[%s1 + $0x34] sm:$0xf]
      %v186 = vld [vmem:[%s1 + $0x38] sm:$0xf]
      %v187 = vld [vmem:[%s1 + $0x3c] sm:$0xf]
      %v188 = vld [vmem:[%s1 + $0x40] sm:$0xf]
      %v189 = vld [vmem:[%s1 + $0x44] sm:$0xf]
      %v190 = vld [vmem:[%s1 + $0x48] sm:$0xf]
      %v191 = vld [vmem:[%s1 + $0x4c] sm:$0xf]
      %v192 = vld [vmem:[%s1 + $0x50] sm:$0xf]
      %v193 = vld [vmem:[%s1 + $0x54] sm:$0xf]
      %v194 = vld [vmem:[%s1 + $0x58] sm:$0xf]
      %v195 = vld [vmem:[%s1 + $0x5c] sm:$0xf]
      %v196 = vld [vmem:[%s1 + $0x60] sm:$0xf]
      %v197 = vld [vmem:[%s165] sm:$0xff]
      %v198 = vld [vmem:[%s165 + $0x8] sm:$0xff]
      %v199 = vld [vmem:[%s165 + $0x10] sm:$0xff]
      %v200 = vld [vmem:[%s165 + $0x18] sm:$0x11]
      %v205 = vunpack.c.l.b16 %v197
      %v206 = vunpack.c.h.b16 %v197
      %v207 = vunpack.c.l.b16 %v198
      %v208 = vunpack.c.h.b16 %v198
      %v209 = vunpack.c.l.b16 %v199
      %v210 = vunpack.c.h.b16 %v199
      %v211 = vunpack.c.l.b16 %v200
      %v212 = vunpack.c.h.b16 %v200
      %v213 = vpack.c.b16 %v207, %v205
      %v214 = vpack.c.b16 %v208, %v206
      %v215 = vpack.c.b16 %v211, %v209
      %v216 = vpack.c.b16 %v212, %v210
      %v244 = vunpack.c.l.b16 %v172
      %v245 = vunpack.c.l.b16 %v173
      %v246 = vunpack.c.l.b16 %v174
      %v247 = vunpack.c.l.b16 %v175
      %v248 = vunpack.c.l.b16 %v176
      %v249 = vunpack.c.l.b16 %v177
      %v250 = vunpack.c.l.b16 %v178
      %v251 = vunpack.c.l.b16 %v179
      %v252 = vunpack.c.l.b16 %v180
      %v253 = vunpack.c.l.b16 %v181
      %v254 = vunpack.c.l.b16 %v182
      %v255 = vunpack.c.l.b16 %v183
      %v256 = vunpack.c.l.b16 %v184
      %v257 = vunpack.c.l.b16 %v185
      %v258 = vunpack.c.l.b16 %v186
      %v259 = vunpack.c.l.b16 %v187
      %v260 = vunpack.c.l.b16 %v188
      %v261 = vunpack.c.l.b16 %v189
      %v262 = vunpack.c.l.b16 %v190
      %v263 = vunpack.c.l.b16 %v191
      %v264 = vunpack.c.l.b16 %v192
      %v265 = vunpack.c.l.b16 %v193
      %v266 = vunpack.c.l.b16 %v194
      %v267 = vunpack.c.l.b16 %v195
      %v268 = vunpack.c.l.b16 %v196
      %v269 = vpack.c.b16 %v245, %v244
      %v270 = vpack.c.b16 %v247, %v246
      %v271 = vpack.c.b16 %v249, %v248
      %v272 = vpack.c.b16 %v251, %v250
      %v273 = vpack.c.b16 %v253, %v252
      %v274 = vpack.c.b16 %v255, %v254
      %v275 = vpack.c.b16 %v257, %v256
      %v276 = vpack.c.b16 %v259, %v258
      %v277 = vpack.c.b16 %v261, %v260
      %v278 = vpack.c.b16 %v263, %v262
      %v279 = vpack.c.b16 %v265, %v264
      %v280 = vpack.c.b16 %v267, %v266
      %v281 = vpack.c.b16 %v268, %v268
      %vm294 = vcmask 588800
      %v296 = vsel %vm294, %v214, 0
      %v299 = vsel %vm294, %v216, 0
      %vm301 = vcmask 1043456
      %v303 = vsel %vm301, %v281, 0
      %305 = vmatprep.subr.bf16.mxu0 0
      %306 = vmatpush1.bf16.msra.mxu0 %v276
      %307 = vmatprep.subr.bf16.mxu0 0
      %308 = vmatpush1.bf16.msra.mxu0 %v275
      %309 = vmatprep.subr.bf16.mxu0 0
      %310 = vmatpush1.bf16.msra.mxu0 %v274
      %311 = vmatprep.subr.bf16.mxu0 0
      %312 = vmatpush1.bf16.msra.mxu0 %v273
      %313 = vmatprep.subr.bf16.mxu0 0
      %314 = vmatpush1.bf16.msra.mxu0 %v272
      %315 = vmatprep.subr.bf16.mxu0 0
      %316 = vmatpush1.bf16.msra.mxu0 %v271
      %317 = vmatprep.subr.bf16.mxu0 0
      %318 = vmatpush1.bf16.msra.mxu0 %v270
      %319 = vmatprep.subr.bf16.mxu0 0
      %320 = vmatpush1.bf16.msra.mxu0 %v269
      %321 = vmatprep.subr.bf16.mxu0 0
      %322 = vmatpush2.bf16.msra.mxu0 0
      %323 = vmatprep.subr.bf16.mxu0 0
      %324 = vmatpush2.bf16.msra.mxu0 0
      %325 = vmatprep.subr.bf16.mxu0 0
      %326 = vmatpush2.bf16.msra.mxu0 0
      %327 = vmatprep.subr.bf16.mxu0 0
      %328 = vmatpush2.bf16.msra.mxu0 %v303
      %329 = vmatprep.subr.bf16.mxu0 0
      %330 = vmatpush2.bf16.msra.mxu0 %v280
      %331 = vmatprep.subr.bf16.mxu0 0
      %332 = vmatpush2.bf16.msra.mxu0 %v279
      %333 = vmatprep.subr.bf16.mxu0 0
      %334 = vmatpush2.bf16.msra.mxu0 %v278
      %335 = vmatprep.subr.bf16.mxu0 0
      %336 = vmatpush2.bf16.msra.mxu0 %v277
      %337 = vmatprep.mubr.bf16.mxu0 %v296
      %338 = vmatmul.mubr.bf16.gmra.mxu0 %v213
      %v339 = vpop.f32.mrf.mxu0
      %v340 = vadd.f32 0.0, %v339
      %v341 = vpop.f32.mrf.mxu0
      %v342 = vpop.f32.mrf.mxu0
      %v343 = vadd.f32 0.0, %v342
      %v344 = vpop.f32.mrf.mxu0
      %345 = vmatprep.mubr.bf16.mxu0 %v299
      %346 = vmatmul.mubr.bf16.gmra.mxu0 %v215
      %v347 = vpop.f32.mrf.mxu0
      %v348 = vadd.f32 0.0, %v347
      %v349 = vpop.f32.mrf.mxu0
      %v350 = vpop.f32.mrf.mxu0
      %v351 = vadd.f32 0.0, %v350
      %v352 = vpop.f32.mrf.mxu0
      %353 = vdwg.mxu0
      %s354 = scalar_lea.vmem %s165, 32
      %v355 = vld [vmem:[%s354] sm:$0xff]
      %v356 = vld [vmem:[%s354 + $0x8] sm:$0xff]
      %v357 = vld [vmem:[%s354 + $0x10] sm:$0xff]
      %v358 = vld [vmem:[%s354 + $0x18] sm:$0x11]
      %v363 = vunpack.c.l.b16 %v355
      %v364 = vunpack.c.h.b16 %v355
      %v365 = vunpack.c.l.b16 %v356
      %v366 = vunpack.c.h.b16 %v356
      %v367 = vunpack.c.l.b16 %v357
      %v368 = vunpack.c.h.b16 %v357
      %v369 = vunpack.c.l.b16 %v358
      %v370 = vunpack.c.h.b16 %v358
      %v371 = vpack.c.b16 %v365, %v363
      %v372 = vpack.c.b16 %v366, %v364
      %v373 = vpack.c.b16 %v369, %v367
      %v374 = vpack.c.b16 %v370, %v368
      %v378 = vsel %vm294, %v372, 0
      %v381 = vsel %vm294, %v374, 0
      %383 = vmatprep.subr.bf16.mxu0 0
      %384 = vmatpush1.bf16.msra.mxu0 %v276
      %385 = vmatprep.subr.bf16.mxu0 0
      %386 = vmatpush1.bf16.msra.mxu0 %v275
      %387 = vmatprep.subr.bf16.mxu0 0
      %388 = vmatpush1.bf16.msra.mxu0 %v274
      %389 = vmatprep.subr.bf16.mxu0 0
      %390 = vmatpush1.bf16.msra.mxu0 %v273
      %391 = vmatprep.subr.bf16.mxu0 0
      %392 = vmatpush1.bf16.msra.mxu0 %v272
      %393 = vmatprep.subr.bf16.mxu0 0
      %394 = vmatpush1.bf16.msra.mxu0 %v271
      %395 = vmatprep.subr.bf16.mxu0 0
      %396 = vmatpush1.bf16.msra.mxu0 %v270
      %397 = vmatprep.subr.bf16.mxu0 0
      %398 = vmatpush1.bf16.msra.mxu0 %v269
      %399 = vmatprep.subr.bf16.mxu0 0
      %400 = vmatpush2.bf16.msra.mxu0 0
      %401 = vmatprep.subr.bf16.mxu0 0
      %402 = vmatpush2.bf16.msra.mxu0 0
      %403 = vmatprep.subr.bf16.mxu0 0
      %404 = vmatpush2.bf16.msra.mxu0 0
      %405 = vmatprep.subr.bf16.mxu0 0
      %406 = vmatpush2.bf16.msra.mxu0 %v303
      %407 = vmatprep.subr.bf16.mxu0 0
      %408 = vmatpush2.bf16.msra.mxu0 %v280
      %409 = vmatprep.subr.bf16.mxu0 0
      %410 = vmatpush2.bf16.msra.mxu0 %v279
      %411 = vmatprep.subr.bf16.mxu0 0
      %412 = vmatpush2.bf16.msra.mxu0 %v278
      %413 = vmatprep.subr.bf16.mxu0 0
      %414 = vmatpush2.bf16.msra.mxu0 %v277
      %415 = vmatprep.mubr.bf16.mxu0 %v378
      %416 = vmatmul.mubr.bf16.gmra.mxu0 %v371
      %v417 = vpop.f32.mrf.mxu0
      %v418 = vadd.f32 0.0, %v417
      %v419 = vpop.f32.mrf.mxu0
      %v420 = vpop.f32.mrf.mxu0
      %v421 = vadd.f32 0.0, %v420
      %v422 = vpop.f32.mrf.mxu0
      %423 = vmatprep.mubr.bf16.mxu0 %v381
      %424 = vmatmul.mubr.bf16.gmra.mxu0 %v373
      %v425 = vpop.f32.mrf.mxu0
      %v426 = vadd.f32 0.0, %v425
      %v427 = vpop.f32.mrf.mxu0
      %v428 = vpop.f32.mrf.mxu0
      %v429 = vadd.f32 0.0, %v428
      %v430 = vpop.f32.mrf.mxu0
      %431 = vdwg.mxu0
      %v432 = vmax.f32 %v340, %v418
      %v433 = vmax.f32 %v343, %v421
      %v434 = vmax.f32 %v348, %v426
      %v435 = vmax.f32 %v351, %v429
      %s436 = scalar_lea.vmem %s165, 64
      %v437 = vld [vmem:[%s436] sm:$0xff]
      %v438 = vld [vmem:[%s436 + $0x8] sm:$0xff]
      %v439 = vld [vmem:[%s436 + $0x10] sm:$0xff]
      %v440 = vld [vmem:[%s436 + $0x18] sm:$0x11]
      %v445 = vunpack.c.l.b16 %v437
      %v446 = vunpack.c.h.b16 %v437
      %v447 = vunpack.c.l.b16 %v438
      %v448 = vunpack.c.h.b16 %v438
      %v449 = vunpack.c.l.b16 %v439
      %v450 = vunpack.c.h.b16 %v439
      %v451 = vunpack.c.l.b16 %v440
      %v452 = vunpack.c.h.b16 %v440
      %v453 = vpack.c.b16 %v447, %v445
      %v454 = vpack.c.b16 %v448, %v446
      %v455 = vpack.c.b16 %v451, %v449
      %v456 = vpack.c.b16 %v452, %v450
      %v460 = vsel %vm294, %v454, 0
      %v463 = vsel %vm294, %v456, 0
      %465 = vmatprep.subr.bf16.mxu0 0
      %466 = vmatpush1.bf16.msra.mxu0 %v276
      %467 = vmatprep.subr.bf16.mxu0 0
      %468 = vmatpush1.bf16.msra.mxu0 %v275
      %469 = vmatprep.subr.bf16.mxu0 0
      %470 = vmatpush1.bf16.msra.mxu0 %v274
      %471 = vmatprep.subr.bf16.mxu0 0
      %472 = vmatpush1.bf16.msra.mxu0 %v273
      %473 = vmatprep.subr.bf16.mxu0 0
      %474 = vmatpush1.bf16.msra.mxu0 %v272
      %475 = vmatprep.subr.bf16.mxu0 0
      %476 = vmatpush1.bf16.msra.mxu0 %v271
      %477 = vmatprep.subr.bf16.mxu0 0
      %478 = vmatpush1.bf16.msra.mxu0 %v270
      %479 = vmatprep.subr.bf16.mxu0 0
      %480 = vmatpush1.bf16.msra.mxu0 %v269
      %481 = vmatprep.subr.bf16.mxu0 0
      %482 = vmatpush2.bf16.msra.mxu0 0
      %483 = vmatprep.subr.bf16.mxu0 0
      %484 = vmatpush2.bf16.msra.mxu0 0
      %485 = vmatprep.subr.bf16.mxu0 0
      %486 = vmatpush2.bf16.msra.mxu0 0
      %487 = vmatprep.subr.bf16.mxu0 0
      %488 = vmatpush2.bf16.msra.mxu0 %v303
      %489 = vmatprep.subr.bf16.mxu0 0
      %490 = vmatpush2.bf16.msra.mxu0 %v280
      %491 = vmatprep.subr.bf16.mxu0 0
      %492 = vmatpush2.bf16.msra.mxu0 %v279
      %493 = vmatprep.subr.bf16.mxu0 0
      %494 = vmatpush2.bf16.msra.mxu0 %v278
      %495 = vmatprep.subr.bf16.mxu0 0
      %496 = vmatpush2.bf16.msra.mxu0 %v277
      %497 = vmatprep.mubr.bf16.mxu0 %v460
      %498 = vmatmul.mubr.bf16.gmra.mxu0 %v453
      %v499 = vpop.f32.mrf.mxu0
      %v500 = vadd.f32 0.0, %v499
      %v501 = vpop.f32.mrf.mxu0
      %v502 = vpop.f32.mrf.mxu0
      %v503 = vadd.f32 0.0, %v502
      %v504 = vpop.f32.mrf.mxu0
      %505 = vmatprep.mubr.bf16.mxu0 %v463
      %506 = vmatmul.mubr.bf16.gmra.mxu0 %v455
      %v507 = vpop.f32.mrf.mxu0
      %v508 = vadd.f32 0.0, %v507
      %v509 = vpop.f32.mrf.mxu0
      %v510 = vpop.f32.mrf.mxu0
      %v511 = vadd.f32 0.0, %v510
      %v512 = vpop.f32.mrf.mxu0
      %513 = vdwg.mxu0
      %v514 = vmax.f32 %v432, %v500
      %v515 = vmax.f32 %v433, %v503
      %v516 = vmax.f32 %v434, %v508
      %v517 = vmax.f32 %v435, %v511
      %s518 = scalar_lea.vmem %s165, 96
      %v519 = vld [vmem:[%s518] sm:$0xff]
      %v520 = vld [vmem:[%s518 + $0x8] sm:$0xff]
      %v521 = vld [vmem:[%s518 + $0x10] sm:$0xff]
      %v522 = vld [vmem:[%s518 + $0x18] sm:$0x11]
      %v527 = vunpack.c.l.b16 %v519
      %v528 = vunpack.c.h.b16 %v519
      %v529 = vunpack.c.l.b16 %v520
      %v530 = vunpack.c.h.b16 %v520
      %v531 = vunpack.c.l.b16 %v521
      %v532 = vunpack.c.h.b16 %v521
      %v533 = vunpack.c.l.b16 %v522
      %v534 = vunpack.c.h.b16 %v522
      %v535 = vpack.c.b16 %v529, %v527
      %v536 = vpack.c.b16 %v530, %v528
      %v537 = vpack.c.b16 %v533, %v531
      %v538 = vpack.c.b16 %v534, %v532
      %v542 = vsel %vm294, %v536, 0
      %v545 = vsel %vm294, %v538, 0
      %547 = vmatprep.subr.bf16.mxu0 0
      %548 = vmatpush1.bf16.msra.mxu0 %v276
      %549 = vmatprep.subr.bf16.mxu0 0
      %550 = vmatpush1.bf16.msra.mxu0 %v275
      %551 = vmatprep.subr.bf16.mxu0 0
      %552 = vmatpush1.bf16.msra.mxu0 %v274
      %553 = vmatprep.subr.bf16.mxu0 0
      %554 = vmatpush1.bf16.msra.mxu0 %v273
      %555 = vmatprep.subr.bf16.mxu0 0
      %556 = vmatpush1.bf16.msra.mxu0 %v272
      %557 = vmatprep.subr.bf16.mxu0 0
      %558 = vmatpush1.bf16.msra.mxu0 %v271
      %559 = vmatprep.subr.bf16.mxu0 0
      %560 = vmatpush1.bf16.msra.mxu0 %v270
      %561 = vmatprep.subr.bf16.mxu0 0
      %562 = vmatpush1.bf16.msra.mxu0 %v269
      %563 = vmatprep.subr.bf16.mxu0 0
      %564 = vmatpush2.bf16.msra.mxu0 0
      %565 = vmatprep.subr.bf16.mxu0 0
      %566 = vmatpush2.bf16.msra.mxu0 0
      %567 = vmatprep.subr.bf16.mxu0 0
      %568 = vmatpush2.bf16.msra.mxu0 0
      %569 = vmatprep.subr.bf16.mxu0 0
      %570 = vmatpush2.bf16.msra.mxu0 %v303
      %571 = vmatprep.subr.bf16.mxu0 0
      %572 = vmatpush2.bf16.msra.mxu0 %v280
      %573 = vmatprep.subr.bf16.mxu0 0
      %574 = vmatpush2.bf16.msra.mxu0 %v279
      %575 = vmatprep.subr.bf16.mxu0 0
      %576 = vmatpush2.bf16.msra.mxu0 %v278
      %577 = vmatprep.subr.bf16.mxu0 0
      %578 = vmatpush2.bf16.msra.mxu0 %v277
      %579 = vmatprep.mubr.bf16.mxu0 %v542
      %580 = vmatmul.mubr.bf16.gmra.mxu0 %v535
      %v581 = vpop.f32.mrf.mxu0
      %v582 = vadd.f32 0.0, %v581
      %v583 = vpop.f32.mrf.mxu0
      %v584 = vpop.f32.mrf.mxu0
      %v585 = vadd.f32 0.0, %v584
      %v586 = vpop.f32.mrf.mxu0
      %587 = vmatprep.mubr.bf16.mxu0 %v545
      %588 = vmatmul.mubr.bf16.gmra.mxu0 %v537
      %v589 = vpop.f32.mrf.mxu0
      %v590 = vadd.f32 0.0, %v589
      %v591 = vpop.f32.mrf.mxu0
      %v592 = vpop.f32.mrf.mxu0
      %v593 = vadd.f32 0.0, %v592
      %v594 = vpop.f32.mrf.mxu0
      %595 = vdwg.mxu0
      %v596 = vmax.f32 %v514, %v582
      %v597 = vmax.f32 %v515, %v585
      %v598 = vmax.f32 %v516, %v590
      %v599 = vmax.f32 %v517, %v593
      %v600 = vld [vmem:[%s2] sm:$0x1]
      %v602 = vlaneseq
      %v603 = vshrl.u32 %v602, 7
      %v604 = vsub.s32 0, %v603
      %v605 = vrot.slane %v600, %v604
      %v607 = vadd.f32 %v596, %v605
      %v608 = vadd.f32 %v597, %v605
      %v609 = vadd.f32 %v598, %v605
      %v610 = vadd.f32 %v599, %v605
      %v611 = vmax.f32 %v607, 0.0
      %v612 = vmax.f32 %v608, 0.0
      %v613 = vmax.f32 %v609, 0.0
      %v614 = vmax.f32 %v610, 0.0
      %v615 = vpack.c.bf16 %v612, %v611
      %v616 = vpack.c.bf16 %v614, %v613
      %v619 = vunpack.c.l.b16 %v615
      %v620 = vunpack.c.h.b16 %v615
      %v621 = vunpack.c.l.b16 %v616
      %v622 = vunpack.c.h.b16 %v616
      %v623 = vpack.c.b16 %v619, %v619
      %v624 = vpack.c.b16 %v620, %v620
      %v625 = vpack.c.b16 %v621, %v621
      %v626 = vpack.c.b16 %v622, %v622
      %vm631 = vcmask 125952
      %632 = vst.msk [vmem:[%s170] sm:$0xf] %vm631, %v623
      %633 = vst.msk [vmem:[%s170 + $0x4] sm:$0xf] %vm631, %v624
      %634 = vst.msk [vmem:[%s170 + $0x8] sm:$0xf] %vm631, %v625
      %vm635 = vcmask 122880
      %vm636 = vsmask.f32 256
      %vm637 = vmand %vm635, %vm636
      %v638 = vld [vmem:[%s170 + $0xc] sm:$0x1]
      %v639 = vsel %vm637, %v626, %v638
      %640 = vst [vmem:[%s170 + $0xc] sm:$0x1] %v639
      %p641 = scmp.lt.s32.totalorder %s14, 1
      %s642 = scalar_select %p641, %s14, 1
      %s643 = smul.addr %s642, 4
      %s644 = smul.addr %s643, 4
      %s645 = scalar_lea.vmem %s3, %s644
      // Predicated region
      $region33: #{net_forward.4} parent=31 // pred_check
        %p646 = pneg %p100
      $region34: #{net_forward.4} parent=31 // pred_check_branch
        %648 = sbr.rel (%p646) target = $region36
      $region35: #{net_forward.4} parent=31 // pred_region
        _
      $region36: #{net_forward.4} parent=31 // pred_fallthru
        _
    $region32: #{net_forward.4} parent=5 // pred_fallthru
      _
    %p649 = scmp.le.s32.totalorder 2, %s9
    // Predicated region
    $region37: #{net_forward.4} parent=5 // pred_check
      %p650 = pneg %p649
    $region38: #{net_forward.4} parent=5 // pred_check_branch
      %652 = sbr.rel (%p650) target = $region40
    $region39: #{net_forward.4} parent=5 // pred_region
      %s653 = ssub.s32 %s9, 2
      // Predicated region
      $region41: #{net_forward.4} parent=39 // pred_check
        %p654 = pneg %p106
      $region42: #{net_forward.4} parent=39 // pred_check_branch
        %656 = sbr.rel (%p654) target = $region44
      $region43: #{net_forward.4} parent=39 // pred_region
        %p657 = scmp.lt.s32.totalorder %s15, 1
        %s658 = scalar_select %p657, %s15, 1
        %s659 = smul.addr %s658, 4
        %s660 = smul.addr %s659, 4
        %s661 = scalar_lea.vmem %s3, %s660
      $region44: #{net_forward.4} parent=39 // pred_fallthru
        _
    $region40: #{net_forward.4} parent=5 // pred_fallthru
      _
  $region6: #{net_forward.4} parent=0 // loop_footer
    %s13 = sadd.s32 1, %s9
  $region7: #{net_forward.4} parent=0 // loop_footer_branch
    %8 = sbr.rel target = $region3
  $region8: #{net_forward.4} parent=0 // loop_exit
    _

// kernel: net_forward.5
$region0: #{net_forward.5}
  #allocation0 [shape = 'u32[]', space=smem, size = 0x4, offset = 0x4, fixed_abs, tag = 'smem constant byte address 0x4 - core index']
  #allocation1 [shape = 'u32[144,128]{1,0:T(1,128)}', space=vmem, size = 0x12000, scoped, tag = 'internal scratch']
  %s0 = inlined_call_operand.vmem [shape: bf16[2,400], index: 0, kind: input, shape index: {}]
  %s1 = inlined_call_operand.vmem [shape: bf16[400,120], index: 1, kind: input, shape index: {}]
  %s2 = inlined_call_operand.vmem [shape: f32[1,120], index: 2, kind: input, shape index: {}]
  %s3 = inlined_call_operand.vmem [shape: bf16[120,84], index: 3, kind: input, shape index: {}]
  %s4 = inlined_call_operand.vmem [shape: f32[1,84], index: 4, kind: input, shape index: {}]
  %s5 = inlined_call_operand.vmem [shape: bf16[84,128], index: 5, kind: input, shape index: {}]
  %s6 = inlined_call_operand.vmem [shape: f32[1,128], index: 6, kind: input, shape index: {}]
  %s7 = inlined_call_operand.hbm [shape: f32[2,128], index: 7, kind: output, shape index: {}]
  %s8 = sld [smem:[#allocation0]]
  $region38: #{net_forward.5} parent=0
    _
  %s10 = ssub.s32 1, %s8
  %s11 = scalar_select 0, %s10, %s8
  $region1: #{net_forward.5} parent=0
    #allocation2 [shape = 'u8[1024]{0}', space=vmem, size = 0x400, scoped, tag = 'output window, operand 0, single buffered']
    #allocation3 [shape = 's32[1]{0}', space=sflag, size = 0x4, scoped, tag = 'scoped memory for net_forward.5']
    %12 = vsyncpa [#allocation3], 0
    // Predicated region
    $region2: #{net_forward.5} parent=1 // pred_check
      _
    $region3: #{net_forward.5} parent=1 // pred_check_branch
      %14 = sbr.rel (0) target = $region5
    $region4: #{net_forward.5} parent=1 // pred_region
      _
    $region5: #{net_forward.5} parent=1 // pred_fallthru
      _
    // Predicated region
    $region6: #{net_forward.5} parent=1 // pred_check
      _
    $region7: #{net_forward.5} parent=1 // pred_check_branch
      %16 = sbr.rel (0) target = $region9
    $region8: #{net_forward.5} parent=1 // pred_region
      _
    $region9: #{net_forward.5} parent=1 // pred_fallthru
      _
    // Predicated region
    $region10: #{net_forward.5} parent=1 // pred_check
      _
    $region11: #{net_forward.5} parent=1 // pred_check_branch
      %18 = sbr.rel (0) target = $region13
    $region12: #{net_forward.5} parent=1 // pred_region
      _
    $region13: #{net_forward.5} parent=1 // pred_fallthru
      _
    // Predicated region
    $region14: #{net_forward.5} parent=1 // pred_check
      _
    $region15: #{net_forward.5} parent=1 // pred_check_branch
      %20 = sbr.rel (0) target = $region17
    $region16: #{net_forward.5} parent=1 // pred_region
      _
    $region17: #{net_forward.5} parent=1 // pred_fallthru
      _
    // Predicated region
    $region18: #{net_forward.5} parent=1 // pred_check
      _
    $region19: #{net_forward.5} parent=1 // pred_check_branch
      %22 = sbr.rel (0) target = $region21
    $region20: #{net_forward.5} parent=1 // pred_region
      _
    $region21: #{net_forward.5} parent=1 // pred_fallthru
      _
    // Predicated region
    $region22: #{net_forward.5} parent=1 // pred_check
      _
    $region23: #{net_forward.5} parent=1 // pred_check_branch
      %24 = sbr.rel (0) target = $region25
    $region24: #{net_forward.5} parent=1 // pred_region
      _
    $region25: #{net_forward.5} parent=1 // pred_fallthru
      _
    // Predicated region
    $region26: #{net_forward.5} parent=1 // pred_check
      _
    $region27: #{net_forward.5} parent=1 // pred_check_branch
      %26 = sbr.rel (0) target = $region29
    $region28: #{net_forward.5} parent=1 // pred_region
      _
    $region29: #{net_forward.5} parent=1 // pred_fallthru
      _
    %v28 = vld [vmem:[%s0] sm:$0xf]
    %v29 = vld [vmem:[%s1] sm:$0xf]
    %v30 = vld [vmem:[%s1 + $0x4] sm:$0xf]
    %v31 = vld [vmem:[%s1 + $0x8] sm:$0xf]
    %v32 = vld [vmem:[%s1 + $0xc] sm:$0xf]
    %v33 = vld [vmem:[%s1 + $0x10] sm:$0xf]
    %v34 = vld [vmem:[%s1 + $0x14] sm:$0xf]
    %v35 = vld [vmem:[%s1 + $0x18] sm:$0xf]
    %v36 = vld [vmem:[%s1 + $0x1c] sm:$0xf]
    %v37 = vld [vmem:[%s1 + $0x20] sm:$0xf]
    %v38 = vld [vmem:[%s1 + $0x24] sm:$0xf]
    %v39 = vld [vmem:[%s1 + $0x28] sm:$0xf]
    %v40 = vld [vmem:[%s1 + $0x2c] sm:$0xf]
    %v41 = vld [vmem:[%s1 + $0x30] sm:$0xf]
    %v42 = vld [vmem:[%s1 + $0x34] sm:$0xf]
    %v43 = vld [vmem:[%s1 + $0x38] sm:$0xf]
    %v44 = vld [vmem:[%s1 + $0x3c] sm:$0xf]
    %v45 = vld [vmem:[%s1 + $0x40] sm:$0xf]
    %v46 = vld [vmem:[%s1 + $0x44] sm:$0xf]
    %v47 = vld [vmem:[%s1 + $0x48] sm:$0xf]
    %v48 = vld [vmem:[%s1 + $0x4c] sm:$0xf]
    %v49 = vld [vmem:[%s1 + $0x50] sm:$0xf]
    %v50 = vld [vmem:[%s1 + $0x54] sm:$0xf]
    %v51 = vld [vmem:[%s1 + $0x58] sm:$0xf]
    %v52 = vld [vmem:[%s1 + $0x5c] sm:$0xf]
    %v53 = vld [vmem:[%s1 + $0x60] sm:$0xf]
    %v54 = vld [vmem:[%s1 + $0x64] sm:$0xf]
    %v55 = vld [vmem:[%s1 + $0x68] sm:$0xf]
    %v56 = vld [vmem:[%s1 + $0x6c] sm:$0xf]
    %v57 = vld [vmem:[%s1 + $0x70] sm:$0xf]
    %v58 = vld [vmem:[%s1 + $0x74] sm:$0xf]
    %v59 = vld [vmem:[%s1 + $0x78] sm:$0xf]
    %v60 = vld [vmem:[%s1 + $0x7c] sm:$0xf]
    %v61 = vld [vmem:[%s1 + $0x80] sm:$0xf]
    %v62 = vld [vmem:[%s1 + $0x84] sm:$0xf]
    %v63 = vld [vmem:[%s1 + $0x88] sm:$0xf]
    %v64 = vld [vmem:[%s1 + $0x8c] sm:$0xf]
    %v65 = vld [vmem:[%s1 + $0x90] sm:$0xf]
    %v66 = vld [vmem:[%s1 + $0x94] sm:$0xf]
    %v67 = vld [vmem:[%s1 + $0x98] sm:$0xf]
    %v68 = vld [vmem:[%s1 + $0x9c] sm:$0xf]
    %v69 = vld [vmem:[%s1 + $0xa0] sm:$0xf]
    %v70 = vld [vmem:[%s1 + $0xa4] sm:$0xf]
    %v71 = vld [vmem:[%s1 + $0xa8] sm:$0xf]
    %v72 = vld [vmem:[%s1 + $0xac] sm:$0xf]
    %v73 = vld [vmem:[%s1 + $0xb0] sm:$0xf]
    %v74 = vld [vmem:[%s1 + $0xb4] sm:$0xf]
    %v75 = vld [vmem:[%s1 + $0xb8] sm:$0xf]
    %v76 = vld [vmem:[%s1 + $0xbc] sm:$0xf]
    %v77 = vld [vmem:[%s1 + $0xc0] sm:$0xf]
    %v78 = vld [vmem:[%s1 + $0xc4] sm:$0xf]
    %v79 = vld [vmem:[%s2] sm:$0x1]
    %v81 = vlaneseq
    %v82 = vshrl.u32 %v81, 7
    %v83 = vsub.s32 0, %v82
    %v84 = vrot.slane %v79, %v83
    %v88 = vunpack.c.l.s4 1966171168
    %v89 = vunpack.c.0.s8 %v88
    %v90 = vlaneseq
    %v91 = vshrl.u32 %v90, 7
    %v92 = vsub.s32 %v89, %v91
    %v93 = vrot.slane %v28, %v92
    %v94 = vcombine.high %v93, %v93
    %v96 = vunpack.c.l.s4 1966171168
    %v97 = vunpack.c.0.s8 %v96
    %v98 = vlaneseq
    %v99 = vshrl.u32 %v98, 7
    %v100 = vsub.s32 %v97, %v99
    %v101 = vrot.slane %v93, %v100
    %v103 = vunpack.c.l.s4 1966171168
    %v104 = vunpack.c.0.s8 %v103
    %v105 = vlaneseq
    %v106 = vshrl.u32 %v105, 7
    %v107 = vsub.s32 %v104, %v106
    %v108 = vrot.slane %v94, %v107
    %v109 = vcombine.high %v101, %v101
    %v110 = vcombine.high %v108, %v108
    %v164 = vunpack.c.l.b16 %v29
    %v165 = vunpack.c.l.b16 %v30
    %v166 = vunpack.c.l.b16 %v31
    %v167 = vunpack.c.l.b16 %v32
    %v168 = vunpack.c.l.b16 %v33
    %v169 = vunpack.c.l.b16 %v34
    %v170 = vunpack.c.l.b16 %v35
    %v171 = vunpack.c.l.b16 %v36
    %v172 = vunpack.c.l.b16 %v37
    %v173 = vunpack.c.l.b16 %v38
    %v174 = vunpack.c.l.b16 %v39
    %v175 = vunpack.c.l.b16 %v40
    %v176 = vunpack.c.l.b16 %v41
    %v177 = vunpack.c.l.b16 %v42
    %v178 = vunpack.c.l.b16 %v43
    %v179 = vunpack.c.l.b16 %v44
    %v180 = vunpack.c.l.b16 %v45
    %v181 = vunpack.c.l.b16 %v46
    %v182 = vunpack.c.l.b16 %v47
    %v183 = vunpack.c.l.b16 %v48
    %v184 = vunpack.c.l.b16 %v49
    %v185 = vunpack.c.l.b16 %v50
    %v186 = vunpack.c.l.b16 %v51
    %v187 = vunpack.c.l.b16 %v52
    %v188 = vunpack.c.l.b16 %v53
    %v189 = vunpack.c.l.b16 %v54
    %v190 = vunpack.c.l.b16 %v55
    %v191 = vunpack.c.l.b16 %v56
    %v192 = vunpack.c.l.b16 %v57
    %v193 = vunpack.c.l.b16 %v58
    %v194 = vunpack.c.l.b16 %v59
    %v195 = vunpack.c.l.b16 %v60
    %v196 = vunpack.c.l.b16 %v61
    %v197 = vunpack.c.l.b16 %v62
    %v198 = vunpack.c.l.b16 %v63
    %v199 = vunpack.c.l.b16 %v64
    %v200 = vunpack.c.l.b16 %v65
    %v201 = vunpack.c.l.b16 %v66
    %v202 = vunpack.c.l.b16 %v67
    %v203 = vunpack.c.l.b16 %v68
    %v204 = vunpack.c.l.b16 %v69
    %v205 = vunpack.c.l.b16 %v70
    %v206 = vunpack.c.l.b16 %v71
    %v207 = vunpack.c.l.b16 %v72
    %v208 = vunpack.c.l.b16 %v73
    %v209 = vunpack.c.l.b16 %v74
    %v210 = vunpack.c.l.b16 %v75
    %v211 = vunpack.c.l.b16 %v76
    %v212 = vunpack.c.l.b16 %v77
    %v213 = vunpack.c.l.b16 %v78
    %v214 = vpack.c.b16 %v165, %v164
    %v215 = vpack.c.b16 %v167, %v166
    %v216 = vpack.c.b16 %v169, %v168
    %v217 = vpack.c.b16 %v171, %v170
    %v218 = vpack.c.b16 %v173, %v172
    %v219 = vpack.c.b16 %v175, %v174
    %v220 = vpack.c.b16 %v177, %v176
    %v221 = vpack.c.b16 %v179, %v178
    %v222 = vpack.c.b16 %v181, %v180
    %v223 = vpack.c.b16 %v183, %v182
    %v224 = vpack.c.b16 %v185, %v184
    %v225 = vpack.c.b16 %v187, %v186
    %v226 = vpack.c.b16 %v189, %v188
    %v227 = vpack.c.b16 %v191, %v190
    %v228 = vpack.c.b16 %v193, %v192
    %v229 = vpack.c.b16 %v195, %v194
    %v230 = vpack.c.b16 %v197, %v196
    %v231 = vpack.c.b16 %v199, %v198
    %v232 = vpack.c.b16 %v201, %v200
    %v233 = vpack.c.b16 %v203, %v202
    %v234 = vpack.c.b16 %v205, %v204
    %v235 = vpack.c.b16 %v207, %v206
    %v236 = vpack.c.b16 %v209, %v208
    %v237 = vpack.c.b16 %v211, %v210
    %v238 = vpack.c.b16 %v213, %v212
    %vm264 = vcmask 130048
    %v266 = vsel %vm264, %v110, 0
    %268 = vmatprep.subr.bf16.mxu0 0
    %269 = vmatpush1.bf16.msra.mxu0 %v221
    %270 = vmatprep.subr.bf16.mxu0 0
    %271 = vmatpush1.bf16.msra.mxu0 %v220
    %272 = vmatprep.subr.bf16.mxu0 0
    %273 = vmatpush1.bf16.msra.mxu0 %v219
    %274 = vmatprep.subr.bf16.mxu0 0
    %275 = vmatpush1.bf16.msra.mxu0 %v218
    %276 = vmatprep.subr.bf16.mxu0 0
    %277 = vmatpush1.bf16.msra.mxu0 %v217
    %278 = vmatprep.subr.bf16.mxu0 0
    %279 = vmatpush1.bf16.msra.mxu0 %v216
    %280 = vmatprep.subr.bf16.mxu0 0
    %281 = vmatpush1.bf16.msra.mxu0 %v215
    %282 = vmatprep.subr.bf16.mxu0 0
    %283 = vmatpush1.bf16.msra.mxu0 %v214
    %284 = vmatprep.subr.bf16.mxu0 0
    %285 = vmatpush2.bf16.msra.mxu0 %v229
    %286 = vmatprep.subr.bf16.mxu0 0
    %287 = vmatpush2.bf16.msra.mxu0 %v228
    %288 = vmatprep.subr.bf16.mxu0 0
    %289 = vmatpush2.bf16.msra.mxu0 %v227
    %290 = vmatprep.subr.bf16.mxu0 0
    %291 = vmatpush2.bf16.msra.mxu0 %v226
    %292 = vmatprep.subr.bf16.mxu0 0
    %293 = vmatpush2.bf16.msra.mxu0 %v225
    %294 = vmatprep.subr.bf16.mxu0 0
    %295 = vmatpush2.bf16.msra.mxu0 %v224
    %296 = vmatprep.subr.bf16.mxu0 0
    %297 = vmatpush2.bf16.msra.mxu0 %v223
    %298 = vmatprep.subr.bf16.mxu0 0
    %299 = vmatpush2.bf16.msra.mxu0 %v222
    %300 = vmatprep.mubr.bf16.mxu0 %v108
    %301 = vmatmul.mubr.bf16.gmra.mxu0 %v101
    %v302 = vpop.f32.mrf.mxu0
    %v303 = vadd.f32 %v84, %v302
    %v304 = vpop.f32.mrf.mxu0
    %v305 = vpop.f32.mrf.mxu0
    %v306 = vpop.f32.mrf.mxu0
    %307 = vdwg.mxu0
    %308 = vmatprep.subr.bf16.mxu0 0
    %309 = vmatpush1.bf16.msra.mxu0 %v237
    %310 = vmatprep.subr.bf16.mxu0 0
    %311 = vmatpush1.bf16.msra.mxu0 %v236
    %312 = vmatprep.subr.bf16.mxu0 0
    %313 = vmatpush1.bf16.msra.mxu0 %v235
    %314 = vmatprep.subr.bf16.mxu0 0
    %315 = vmatpush1.bf16.msra.mxu0 %v234
    %316 = vmatprep.subr.bf16.mxu0 0
    %317 = vmatpush1.bf16.msra.mxu0 %v233
    %318 = vmatprep.subr.bf16.mxu0 0
    %319 = vmatpush1.bf16.msra.mxu0 %v232
    %320 = vmatprep.subr.bf16.mxu0 0
    %321 = vmatpush1.bf16.msra.mxu0 %v231
    %322 = vmatprep.subr.bf16.mxu0 0
    %323 = vmatpush1.bf16.msra.mxu0 %v230
    %324 = vmatprep.subr.bf16.mxu0 0
    %325 = vmatpush2.bf16.msra.mxu0 0
    %326 = vmatprep.subr.bf16.mxu0 0
    %327 = vmatpush2.bf16.msra.mxu0 0
    %328 = vmatprep.subr.bf16.mxu0 0
    %329 = vmatpush2.bf16.msra.mxu0 0
    %330 = vmatprep.subr.bf16.mxu0 0
    %331 = vmatpush2.bf16.msra.mxu0 0
    %332 = vmatprep.subr.bf16.mxu0 0
    %333 = vmatpush2.bf16.msra.mxu0 0
    %334 = vmatprep.subr.bf16.mxu0 0
    %335 = vmatpush2.bf16.msra.mxu0 0
    %336 = vmatprep.subr.bf16.mxu0 0
    %337 = vmatpush2.bf16.msra.mxu0 0
    %338 = vmatprep.subr.bf16.mxu0 0
    %339 = vmatpush2.bf16.msra.mxu0 %v238
    %340 = vmatprep.mubr.bf16.mxu0 %v266
    %341 = vmatmul.mubr.bf16.gmra.mxu0 %v109
    %v342 = vpop.f32.mrf.mxu0
    %v343 = vadd.f32 %v303, %v342
    %v344 = vpop.f32.mrf.mxu0
    %v345 = vpop.f32.mrf.mxu0
    %v346 = vpop.f32.mrf.mxu0
    %347 = vdwg.mxu0
    %v348 = vmax.f32 %v343, 0.0
    %v349 = vpack.c.bf16 %v348, %v348
    %v350 = vld [vmem:[%s3] sm:$0xf]
    %v351 = vld [vmem:[%s3 + $0x4] sm:$0xf]
    %v352 = vld [vmem:[%s3 + $0x8] sm:$0xf]
    %v353 = vld [vmem:[%s3 + $0xc] sm:$0xf]
    %v354 = vld [vmem:[%s3 + $0x10] sm:$0xf]
    %v355 = vld [vmem:[%s3 + $0x14] sm:$0xf]
    %v356 = vld [vmem:[%s3 + $0x18] sm:$0xf]
    %v357 = vld [vmem:[%s3 + $0x1c] sm:$0xf]
    %v358 = vld [vmem:[%s3 + $0x20] sm:$0xf]
    %v359 = vld [vmem:[%s3 + $0x24] sm:$0xf]
    %v360 = vld [vmem:[%s3 + $0x28] sm:$0xf]
    %v361 = vld [vmem:[%s3 + $0x2c] sm:$0xf]
    %v362 = vld [vmem:[%s3 + $0x30] sm:$0xf]
    %v363 = vld [vmem:[%s3 + $0x34] sm:$0xf]
    %v364 = vld [vmem:[%s3 + $0x38] sm:$0xf]
    %v365 = vld [vmem:[%s4] sm:$0x1]
    %v367 = vlaneseq
    %v368 = vshrl.u32 %v367, 7
    %v369 = vsub.s32 0, %v368
    %v370 = vrot.slane %v365, %v369
    %v387 = vunpack.c.l.b16 %v350
    %v388 = vunpack.c.l.b16 %v351
    %v389 = vunpack.c.l.b16 %v352
    %v390 = vunpack.c.l.b16 %v353
    %v391 = vunpack.c.l.b16 %v354
    %v392 = vunpack.c.l.b16 %v355
    %v393 = vunpack.c.l.b16 %v356
    %v394 = vunpack.c.l.b16 %v357
    %v395 = vunpack.c.l.b16 %v358
    %v396 = vunpack.c.l.b16 %v359
    %v397 = vunpack.c.l.b16 %v360
    %v398 = vunpack.c.l.b16 %v361
    %v399 = vunpack.c.l.b16 %v362
    %v400 = vunpack.c.l.b16 %v363
    %v401 = vunpack.c.l.b16 %v364
    %v402 = vpack.c.b16 %v388, %v387
    %v403 = vpack.c.b16 %v390, %v389
    %v404 = vpack.c.b16 %v392, %v391
    %v405 = vpack.c.b16 %v394, %v393
    %v406 = vpack.c.b16 %v396, %v395
    %v407 = vpack.c.b16 %v398, %v397
    %v408 = vpack.c.b16 %v400, %v399
    %v409 = vpack.c.b16 %v401, %v401
    %vm417 = vcmask 982016
    %v419 = vsel %vm417, %v349, 0
    %vm421 = vcmask 1043456
    %v423 = vsel %vm421, %v409, 0
    %425 = vmatprep.subr.bf16.mxu0 0
    %426 = vmatpush1.bf16.msra.mxu0 %v423
    %427 = vmatprep.subr.bf16.mxu0 0
    %428 = vmatpush1.bf16.msra.mxu0 %v408
    %429 = vmatprep.subr.bf16.mxu0 0
    %430 = vmatpush1.bf16.msra.mxu0 %v407
    %431 = vmatprep.subr.bf16.mxu0 0
    %432 = vmatpush1.bf16.msra.mxu0 %v406
    %433 = vmatprep.subr.bf16.mxu0 0
    %434 = vmatpush1.bf16.msra.mxu0 %v405
    %435 = vmatprep.subr.bf16.mxu0 0
    %436 = vmatpush1.bf16.msra.mxu0 %v404
    %437 = vmatprep.subr.bf16.mxu0 0
    %438 = vmatpush1.bf16.msra.mxu0 %v403
    %439 = vmatprep.subr.bf16.mxu0 0
    %440 = vmatpush1.bf16.msra.mxu0 %v402
    %441 = vmatprep.subr.bf16.mxu0 0
    %442 = vmatpush2.bf16.msra.mxu0 0
    %443 = vmatprep.subr.bf16.mxu0 0
    %444 = vmatpush2.bf16.msra.mxu0 0
    %445 = vmatprep.subr.bf16.mxu0 0
    %446 = vmatpush2.bf16.msra.mxu0 0
    %447 = vmatprep.subr.bf16.mxu0 0
    %448 = vmatpush2.bf16.msra.mxu0 0
    %449 = vmatprep.subr.bf16.mxu0 0
    %450 = vmatpush2.bf16.msra.mxu0 0
    %451 = vmatprep.subr.bf16.mxu0 0
    %452 = vmatpush2.bf16.msra.mxu0 0
    %453 = vmatprep.subr.bf16.mxu0 0
    %454 = vmatpush2.bf16.msra.mxu0 0
    %455 = vmatprep.subr.bf16.mxu0 0
    %456 = vmatpush2.bf16.msra.mxu0 0
    %457 = vmatprep.mubr.bf16.mxu0 0
    %458 = vmatmul.mubr.bf16.gmra.mxu0 %v419
    %v459 = vpop.f32.mrf.mxu0
    %v460 = vadd.f32 %v370, %v459
    %v461 = vpop.f32.mrf.mxu0
    %v462 = vpop.f32.mrf.mxu0
    %v463 = vpop.f32.mrf.mxu0
    %464 = vdwg.mxu0
    %v465 = vmax.f32 %v460, 0.0
    %v466 = vpack.c.bf16 %v465, %v465
    %v467 = vld [vmem:[%s5] sm:$0xf]
    %v468 = vld [vmem:[%s5 + $0x4] sm:$0xf]
    %v469 = vld [vmem:[%s5 + $0x8] sm:$0xf]
    %v470 = vld [vmem:[%s5 + $0xc] sm:$0xf]
    %v471 = vld [vmem:[%s5 + $0x10] sm:$0xf]
    %v472 = vld [vmem:[%s5 + $0x14] sm:$0xf]
    %v473 = vld [vmem:[%s5 + $0x18] sm:$0xf]
    %v474 = vld [vmem:[%s5 + $0x1c] sm:$0xf]
    %v475 = vld [vmem:[%s5 + $0x20] sm:$0xf]
    %v476 = vld [vmem:[%s5 + $0x24] sm:$0xf]
    %v477 = vld [vmem:[%s5 + $0x28] sm:$0x3]
    %v478 = vld [vmem:[%s6] sm:$0x1]
    %v480 = vlaneseq
    %v481 = vshrl.u32 %v480, 7
    %v482 = vsub.s32 0, %v481
    %v483 = vrot.slane %v478, %v482
    %v496 = vunpack.c.l.b16 %v467
    %v497 = vunpack.c.l.b16 %v468
    %v498 = vunpack.c.l.b16 %v469
    %v499 = vunpack.c.l.b16 %v470
    %v500 = vunpack.c.l.b16 %v471
    %v501 = vunpack.c.l.b16 %v472
    %v502 = vunpack.c.l.b16 %v473
    %v503 = vunpack.c.l.b16 %v474
    %v504 = vunpack.c.l.b16 %v475
    %v505 = vunpack.c.l.b16 %v476
    %v506 = vunpack.c.l.b16 %v477
    %v507 = vpack.c.b16 %v497, %v496
    %v508 = vpack.c.b16 %v499, %v498
    %v509 = vpack.c.b16 %v501, %v500
    %v510 = vpack.c.b16 %v503, %v502
    %v511 = vpack.c.b16 %v505, %v504
    %v512 = vpack.c.b16 %v506, %v506
    %vm518 = vcmask 687104
    %v520 = vsel %vm518, %v466, 0
    %vm522 = vcmask 1041408
    %v524 = vsel %vm522, %v512, 0
    %526 = vmatprep.subr.bf16.mxu0 0
    %527 = vmatpush1.bf16.msra.mxu0 0
    %528 = vmatprep.subr.bf16.mxu0 0
    %529 = vmatpush1.bf16.msra.mxu0 0
    %530 = vmatprep.subr.bf16.mxu0 0
    %531 = vmatpush1.bf16.msra.mxu0 %v524
    %532 = vmatprep.subr.bf16.mxu0 0
    %533 = vmatpush1.bf16.msra.mxu0 %v511
    %534 = vmatprep.subr.bf16.mxu0 0
    %535 = vmatpush1.bf16.msra.mxu0 %v510
    %536 = vmatprep.subr.bf16.mxu0 0
    %537 = vmatpush1.bf16.msra.mxu0 %v509
    %538 = vmatprep.subr.bf16.mxu0 0
    %539 = vmatpush1.bf16.msra.mxu0 %v508
    %540 = vmatprep.subr.bf16.mxu0 0
    %541 = vmatpush1.bf16.msra.mxu0 %v507
    %542 = vmatprep.subr.bf16.mxu0 0
    %543 = vmatpush2.bf16.msra.mxu0 0
    %544 = vmatprep.subr.bf16.mxu0 0
    %545 = vmatpush2.bf16.msra.mxu0 0
    %546 = vmatprep.subr.bf16.mxu0 0
    %547 = vmatpush2.bf16.msra.mxu0 0
    %548 = vmatprep.subr.bf16.mxu0 0
    %549 = vmatpush2.bf16.msra.mxu0 0
    %550 = vmatprep.subr.bf16.mxu0 0
    %551 = vmatpush2.bf16.msra.mxu0 0
    %552 = vmatprep.subr.bf16.mxu0 0
    %553 = vmatpush2.bf16.msra.mxu0 0
    %554 = vmatprep.subr.bf16.mxu0 0
    %555 = vmatpush2.bf16.msra.mxu0 0
    %556 = vmatprep.subr.bf16.mxu0 0
    %557 = vmatpush2.bf16.msra.mxu0 0
    %558 = vmatprep.mubr.bf16.mxu0 0
    %559 = vmatmul.mubr.bf16.gmra.mxu0 %v520
    %v560 = vpop.f32.mrf.mxu0
    %v561 = vadd.f32 %v483, %v560
    %v562 = vpop.f32.mrf.mxu0
    %v563 = vpop.f32.mrf.mxu0
    %v564 = vpop.f32.mrf.mxu0
    %565 = vdwg.mxu0
    %566 = vst [vmem:[#allocation2] sm:$0x3] %v561
    // Predicated region
    $region30: #{net_forward.5} parent=1 // pred_check
      _
    $region31: #{net_forward.5} parent=1 // pred_check_branch
      %568 = sbr.rel (0) target = $region33
    $region32: #{net_forward.5} parent=1 // pred_region
      %s570 = ssub.s32 32, 32
      %571 = vsyncadd [#allocation3], %s570
      %s573 = sshll.u32 [#allocation2], 4
      %s574 = int_to_ptr.vmem [resolvable:$true] %s573
      %576 = dma.vmem_to_hbm [thread:$0]  %s574, 32, %s7, [#allocation3]
    $region33: #{net_forward.5} parent=1 // pred_fallthru
      _
    // Predicated region
    $region34: #{net_forward.5} parent=1 // pred_check
      _
    $region35: #{net_forward.5} parent=1 // pred_check_branch
      %578 = sbr.rel (0) target = $region37
    $region36: #{net_forward.5} parent=1 // pred_region
      %579 = dma.done [#allocation3], 32
    $region37: #{net_forward.5} parent=1 // pred_fallthru
      _
    %580 = vsyncpa [#allocation3], 1

</llo_original>
